<compile_context>
chip_gen: v7x
topology: tpu7x:2x2x1
jax: 0.10.0
libtpu: 0.0.40
codegen_flags: <defaults>
</compile_context>

<pallas_src>
import functools

import jax
import jax.numpy as jnp
from jax.experimental import pallas as pl
from jax.experimental.pallas import tpu as pltpu


# ----------------------------------------------------------------------------
# Packed-bias layout (shared by pack_params and the kernel)
# ----------------------------------------------------------------------------

def _bias_layout(num_levels):
    rows = {"emb_b1": 0, "emb_b2": 1, "conv": 2}          # conv rows: 2 .. 2+2L-1
    nxt = 2 + 2 * num_levels
    for name in ("gmf_b", "res_b", "res_gamma", "res_beta", "mil_b1", "w23", "b23"):
        rows[name] = nxt
        nxt += 1
    padded = ((nxt + 7) // 8) * 8
    return rows, padded


# ----------------------------------------------------------------------------
# Fused Pallas kernel
# ----------------------------------------------------------------------------

def _multimodal_fused_kernel(
    # inputs
    x_ref,            # (R, D_in)      f32
    emb_w1_ref,       # (D_in, D_h)    bf16
    emb_w2_ref,       # (D_h, F)       bf16
    conv_w_ref,       # (2L, 2F, F)    bf16   [W_(t-d); W_t] stacked on K
    gmf_w_ref,        # (F, 2F)        bf16   [W1 | W2] stacked on N
    res_w_ref,        # (F, F)         bf16
    mil_w1_ref,       # (F, H)         bf16
    bias_ref,         # (16, 128)      f32    packed biases / LN params / w23 / b23
    # outputs
    satt_ref,         # (R, F)         f32
    avf_ref,          # (R, 1)         f32
    *, t_len, dilations):
    f32 = jnp.float32
    bf16 = jnp.bfloat16
    R, F = satt_ref.shape
    H = mil_w1_ref.shape[1]
    DH = emb_w1_ref.shape[1]
    rows, _ = _bias_layout(len(dilations))

    def dot(a, b):  # MXU matmul, bf16 operands, f32 accumulation
        return jnp.dot(a.astype(bf16), b, preferred_element_type=f32)

    biases = bias_ref[...]                                  # (16, 128) f32, VMEM resident

    def brow(name, n, off=0):
        r = rows[name] + off
        return biases[r:r + 1, :n]                          # (1, n) static slice

    # Position within its sequence (each block holds whole sequences) and the
    # per-dilation causal masks, computed ONCE (JAX does not CSE broadcasts).
    seq_pos = jax.lax.broadcasted_iota(jnp.int32, (R, 1), 0) % t_len
    masks = [seq_pos >= d for d in dilations]               # (R, 1) bool

    # ---- embedding: Linear -> ReLU -> (Dropout p=0) -> Linear -> ReLU ----
    h = jnp.maximum(dot(x_ref[...], emb_w1_ref[...]) + brow("emb_b1", DH), 0.0)
    h = jnp.maximum(dot(h, emb_w2_ref[...]) + brow("emb_b2", F), 0.0)

    # ---- TCN: L TemporalBlocks, kernel_size=2, dilation 2^level, dropout=0 ----
    for lvl, d in enumerate(dilations):
        res = h
        for j in range(2):                                  # two weight-normed convs/block
            w = conv_w_ref[2 * lvl + j]                     # (2F, F) bf16
            b = brow("conv", F, off=2 * lvl + j)            # (1, F)  f32
            # causal shift by d: XLU roll + mask (kills wrap-around / cross-sequence rows)
            hs = jnp.where(masks[lvl], pltpu.roll(h, shift=d, axis=0), 0.0)
            cat = jnp.concatenate([hs.astype(bf16), h.astype(bf16)], axis=1)   # (R, 2F)
            h = jnp.maximum(jnp.dot(cat, w, preferred_element_type=f32) + b, 0.0)
        h = jnp.maximum(h + res, 0.0)                       # relu(out + residual)

    # ---- GatedMultimodalFusion(h, h): both projections in one N=2F matmul ----
    hh = dot(h, gmf_w_ref[...]) + brow("gmf_b", 2 * F)
    h1 = hh[:, :F]
    h2 = hh[:, F:]
    gate = jax.nn.sigmoid(h1 + h2)
    g = gate * h1 + (1.0 - gate) * h2

    # ---- ResidualFusionBlock: LayerNorm(relu(fc(g))) + g ----
    r = jnp.maximum(dot(g, res_w_ref[...]) + brow("res_b", F), 0.0)
    mean = jnp.mean(r, axis=-1, keepdims=True)
    var = jnp.mean((r - mean) ** 2, axis=-1, keepdims=True)
    r = ((r - mean) * jax.lax.rsqrt(var + 1e-5) * brow("res_gamma", F)
         + brow("res_beta", F) + g)
    satt_ref[...] = r.astype(satt_ref.dtype)

    # ---- MIL regressor: Linear->ReLU-> (w2,w3 folded to (H,1) at pack time) -> sigmoid
    m = jnp.maximum(dot(r, mil_w1_ref[...]) + brow("mil_b1", H), 0.0)
    logit = jnp.sum(m * brow("w23", H), axis=-1, keepdims=True) + brow("b23", 1)
    avf_ref[...] = jax.nn.sigmoid(logit).astype(avf_ref.dtype)


# ----------------------------------------------------------------------------
# Wrapper
# ----------------------------------------------------------------------------

def _pick_batch_block(B, T, target_rows, min_steps=1):
    """Largest divisor of B with bb*T <= target_rows and >= min_steps grid steps."""
    best = 1
    for cand in range(1, B + 1):
        if B % cand != 0:
            continue
        if cand * T > max(target_rows, T):
            continue
        if B // cand < min(min_steps, B):
            continue
        best = cand
    return best


def multimodal_forward(packed, data, seq_len=None, target_rows=2048, min_grid_steps=1):
    """data: (B, T, input_size) float32.  Returns dict like the torch module."""
    B, T, D = data.shape
    F = packed["res_w"].shape[0]
    num_tcn_levels = packed["conv_w"].shape[0] // 2
    M = B * T
    assert T % 8 == 0, "T must be a multiple of 8 (f32 sublane tiling)"
    bb = _pick_batch_block(B, T, target_rows, min_grid_steps)
    R = bb * T                                   # rows per grid step (whole sequences)
    grid = (B // bb,)
    dilations = tuple(2 ** i for i in range(num_tcn_levels))

    x = data.reshape(M, D).astype(jnp.float32)

    def row_spec(ncols):
        return pl.BlockSpec((R, ncols), lambda i: (i, 0))

    def full_spec(arr):
        n = arr.ndim
        return pl.BlockSpec(arr.shape, lambda i, _n=n: (0,) * _n)

    weights = [packed["emb_w1"], packed["emb_w2"], packed["conv_w"], packed["gmf_w"],
               packed["res_w"], packed["mil_w1"], packed["bias"]]

    kernel = functools.partial(_multimodal_fused_kernel, t_len=T, dilations=dilations)

    satt, avf = pl.pallas_call(
        kernel,
        out_shape=(jax.ShapeDtypeStruct((M, F), jnp.float32),
                   jax.ShapeDtypeStruct((M, 1), jnp.float32)),
        grid=grid,
        in_specs=[row_spec(D)] + [full_spec(w) for w in weights],
        out_specs=(row_spec(F), row_spec(1)),
        compiler_params=pltpu.CompilerParams(
            dimension_semantics=("parallel",),
            vmem_limit_bytes=48 * 1024 * 1024),
    )(x, *weights)

    avf_out = avf.reshape(B, T)
    # MIL.filter: with seq_len=None it returns the logits unchanged.
    # TODO(synk): seq_len != None path (per-sample top-k mean) is data-dependent; not implemented.
    mmil_logits = avf_out
    return {"output": mmil_logits, "avf_out": avf_out, "satt_f": satt.reshape(B, T, F)}


# ----------------------------------------------------------------------------
# Parameters (deterministic, synthetic) + packing for the fused kernel
# ----------------------------------------------------------------------------

def init_params(key, input_size, feature_dim=64, h_dim=32, num_tcn_levels=3):
    def nxt():
        nonlocal key
        key, sub = jax.random.split(key)
        return sub

    def lin(k_in, k_out):
        # stored as (in, out) so kernels compute x @ w + b (== torch x @ W.T + b)
        w = jax.random.normal(nxt(), (k_in, k_out), jnp.float32) * 0.05
        b = jax.random.normal(nxt(), (1, k_out), jnp.float32) * 0.01
        return w, b

    p = {}
    p["emb_w1"], p["emb_b1"] = lin(input_size, input_size // 2)
    p["emb_w2"], p["emb_b2"] = lin(input_size // 2, feature_dim)
    # TCN: weight_norm at init == raw weight, so plain weights suffice.
    for i in range(num_tcn_levels):
        for tag in ("a", "b"):
            w0, _ = lin(feature_dim, feature_dim)   # tap at t - dilation
            w1, bb = lin(feature_dim, feature_dim)  # tap at t
            p[f"tcn{i}_{tag}_w0"], p[f"tcn{i}_{tag}_w1"], p[f"tcn{i}_{tag}_b"] = w0, w1, bb
    p["gmf_w1"], p["gmf_b1"] = lin(feature_dim, feature_dim)
    p["gmf_w2"], p["gmf_b2"] = lin(feature_dim, feature_dim)
    p["res_w"], p["res_b"] = lin(feature_dim, feature_dim)
    p["res_gamma"] = jnp.ones((1, feature_dim), jnp.float32)
    p["res_beta"] = jnp.zeros((1, feature_dim), jnp.float32)
    p["mil_w1"], p["mil_b1"] = lin(feature_dim, h_dim)
    p["mil_w2"], p["mil_b2"] = lin(h_dim, 32)
    p["mil_w3"], p["mil_b3"] = lin(32, 1)
    return p


def pack_params(p, num_tcn_levels=3):
    """Pack weights into the K/N-dense bf16 layouts and one f32 bias slab."""
    bf16 = jnp.bfloat16
    F = p["res_w"].shape[0]
    assert 2 * F <= 128, "gmf bias row assumes 2*feature_dim <= 128"
    rows, nrows = _bias_layout(num_tcn_levels)

    conv_w = jnp.stack(
        [jnp.concatenate([p[f"tcn{i}_{t}_w0"], p[f"tcn{i}_{t}_w1"]], axis=0)
         for i in range(num_tcn_levels) for t in ("a", "b")], axis=0)        # (2L, 2F, F)

    # Fold mil_w2 @ mil_w3 (no nonlinearity between them) into one (H,1) weight + scalar.
    w23 = p["mil_w2"] @ p["mil_w3"]                                          # (H, 1)
    b23 = p["mil_b2"] @ p["mil_w3"] + p["mil_b3"]                            # (1, 1)

    entries = [(rows["emb_b1"], p["emb_b1"]), (rows["emb_b2"], p["emb_b2"])]
    for i in range(num_tcn_levels):
        for j, t in enumerate(("a", "b")):
            entries.append((rows["conv"] + 2 * i + j, p[f"tcn{i}_{t}_b"]))
    entries += [
        (rows["gmf_b"], jnp.concatenate([p["gmf_b1"], p["gmf_b2"]], axis=1)),
        (rows["res_b"], p["res_b"]),
        (rows["res_gamma"], p["res_gamma"]),
        (rows["res_beta"], p["res_beta"]),
        (rows["mil_b1"], p["mil_b1"]),
        (rows["w23"], w23.T),
        (rows["b23"], b23),
    ]
    bias = jnp.zeros((nrows, 128), jnp.float32)
    for r, v in entries:
        v = jnp.asarray(v, jnp.float32).reshape(-1)
        bias = bias.at[r, : v.shape[0]].set(v)

    return {
        "emb_w1": p["emb_w1"].astype(bf16),
        "emb_w2": p["emb_w2"].astype(bf16),
        "conv_w": conv_w.astype(bf16),
        "gmf_w": jnp.concatenate([p["gmf_w1"], p["gmf_w2"]], axis=1).astype(bf16),
        "res_w": p["res_w"].astype(bf16),
        "mil_w1": p["mil_w1"].astype(bf16),
        "bias": bias,
    }


# ----------------------------------------------------------------------------
# Pure-JAX reference (runtime sanity check).  It consumes the same bf16-rounded
# weights the kernel stores (so weight quantization cancels) but does all math
# in f32 / HIGHEST precision — isolating kernel-specific errors.
# ----------------------------------------------------------------------------

def _reference_forward(params, data, feature_dim=64, num_tcn_levels=3):
    hp = jax.lax.Precision.HIGHEST
    q = lambda w: w.astype(jnp.bfloat16).astype(jnp.float32)
    B, T, D = data.shape
    F = feature_dim
    x = data.reshape(B * T, D)
    h = jax.nn.relu(jnp.dot(x, q(params["emb_w1"]), precision=hp) + params["emb_b1"])
    h = jax.nn.relu(jnp.dot(h, q(params["emb_w2"]), precision=hp) + params["emb_b2"])
    f = h.reshape(B, T, F)
    for i in range(num_tcn_levels):
        d = 2 ** i
        res = f
        for tag in ("a", "b"):
            w0 = q(params[f"tcn{i}_{tag}_w0"])
            w1 = q(params[f"tcn{i}_{tag}_w1"])
            b = params[f"tcn{i}_{tag}_b"]
            fs = jnp.concatenate([jnp.zeros((B, d, F), f.dtype), f[:, :T - d, :]], axis=1)
            f = jax.nn.relu(jnp.einsum("btc,cd->btd", fs, w0, precision=hp)
                            + jnp.einsum("btc,cd->btd", f, w1, precision=hp) + b)
        f = jax.nn.relu(f + res)
    g_in = f.reshape(B * T, F)
    h1 = jnp.dot(g_in, q(params["gmf_w1"]), precision=hp) + params["gmf_b1"]
    h2 = jnp.dot(g_in, q(params["gmf_w2"]), precision=hp) + params["gmf_b2"]
    gate = jax.nn.sigmoid(h1 + h2)
    g = gate * h1 + (1.0 - gate) * h2
    r = jax.nn.relu(jnp.dot(g, q(params["res_w"]), precision=hp) + params["res_b"])
    mean = jnp.mean(r, axis=-1, keepdims=True)
    var = jnp.mean((r - mean) ** 2, axis=-1, keepdims=True)
    r = (r - mean) * jax.lax.rsqrt(var + 1e-5) * params["res_gamma"] + params["res_beta"] + g
    m = jax.nn.relu(jnp.dot(r, q(params["mil_w1"]), precision=hp) + params["mil_b1"])
    m = jnp.dot(m, params["mil_w2"], precision=hp) + params["mil_b2"]
    m = jax.nn.sigmoid(jnp.dot(m, params["mil_w3"], precision=hp) + params["mil_b3"])
    avf = m.reshape(B, T)
    return {"output": avf, "avf_out": avf, "satt_f": r.reshape(B, T, F)}


# ----------------------------------------------------------------------------
# Demo
# ----------------------------------------------------------------------------

if __name__ == "__main__":
    B, T = 2, 16          # 2 sequences of length 16
    INPUT_SIZE = 32       # embedding: 32 -> 16 -> 64
    FEATURE_DIM = 64
    H_DIM = 32

    key = jax.random.PRNGKey(0)
    key, pkey, dkey = jax.random.split(key, 3)
    params = init_params(pkey, INPUT_SIZE, feature_dim=FEATURE_DIM, h_dim=H_DIM)
    packed = pack_params(params)
    data = jax.random.normal(dkey, (B, T, INPUT_SIZE), jnp.float32)

    # v7x has 2 TensorCores per chip -> keep >= 2 grid steps there; on v5e/v6e a
    # single big step avoids pointless pipeline overhead.
    kind = ""
    try:
        kind = jax.devices()[0].device_kind.lower()
    except Exception:
        pass
    min_steps = 2 if ("v7" in kind or "7x" in kind) else 1

    fwd = jax.jit(functools.partial(multimodal_forward,
                                    target_rows=2048, min_grid_steps=min_steps))
    out = fwd(packed, data)
    jax.block_until_ready(out)

    assert out["output"].shape == (B, T)
    assert out["avf_out"].shape == (B, T)
    assert out["satt_f"].shape == (B, T, FEATURE_DIM)

    # Sanity check (tolerance covers bf16 activation rounding + MXU accumulation order).
    ref = _reference_forward(params, data, feature_dim=FEATURE_DIM)
    err_satt = float(jnp.max(jnp.abs(out["satt_f"] - ref["satt_f"])))
    err_avf = float(jnp.max(jnp.abs(out["avf_out"] - ref["avf_out"])))
    assert err_satt < 5e-2 and err_avf < 5e-2, (err_satt, err_avf)

    print("KERNEL_OK")
</pallas_src>

<mosaic_0001>
module attributes {stable_mosaic.version = 11 : i64} {
  func.func @_multimodal_fused_kernel(%arg0: i32, %arg1: memref<32x32xf32, #tpu.memory_space<vmem>>, %arg2: memref<32x16xbf16, #tpu.memory_space<vmem>>, %arg3: memref<16x64xbf16, #tpu.memory_space<vmem>>, %arg4: memref<6x128x64xbf16, #tpu.memory_space<vmem>>, %arg5: memref<64x128xbf16, #tpu.memory_space<vmem>>, %arg6: memref<64x64xbf16, #tpu.memory_space<vmem>>, %arg7: memref<64x32xbf16, #tpu.memory_space<vmem>>, %arg8: memref<16x128xf32, #tpu.memory_space<vmem>>, %arg9: memref<32x64xf32, #tpu.memory_space<vmem>>, %arg10: memref<32x1xf32, #tpu.memory_space<vmem>>) attributes {dimension_semantics = [#tpu.dimension_semantics<parallel>], iteration_bounds = array<i64: 1>, scalar_prefetch = 0 : i64, scratch_operands = 0 : i64, tpu.core_type = #tpu.core_type<tc>, window_params = [{transform_indices = @transform_0, window_bounds = array<i64: 32, 32>}, {pipeline_mode = #tpu.pipeline_mode<synchronous>, transform_indices = @transform_1, window_bounds = array<i64: 32, 16>}, {pipeline_mode = #tpu.pipeline_mode<synchronous>, transform_indices = @transform_2, window_bounds = array<i64: 16, 64>}, {pipeline_mode = #tpu.pipeline_mode<synchronous>, transform_indices = @transform_3, window_bounds = array<i64: 6, 128, 64>}, {pipeline_mode = #tpu.pipeline_mode<synchronous>, transform_indices = @transform_4, window_bounds = array<i64: 64, 128>}, {pipeline_mode = #tpu.pipeline_mode<synchronous>, transform_indices = @transform_5, window_bounds = array<i64: 64, 64>}, {pipeline_mode = #tpu.pipeline_mode<synchronous>, transform_indices = @transform_6, window_bounds = array<i64: 64, 32>}, {pipeline_mode = #tpu.pipeline_mode<synchronous>, transform_indices = @transform_7, window_bounds = array<i64: 16, 128>}, {transform_indices = @transform_8, window_bounds = array<i64: 32, 64>}, {transform_indices = @transform_9, window_bounds = array<i64: 32, 1>}]} {
    %c0 = arith.constant 0 : index
    %c0_0 = arith.constant 0 : index
    %0 = vector.load %arg8[%c0, %c0_0] : memref<16x128xf32, #tpu.memory_space<vmem>>, vector<16x128xf32>
    %1 = tpu.iota {dimensions = array<i32: 0>} : vector<32x1xi32>
    %c16_i32 = arith.constant 16 : i32
    %c0_i32 = arith.constant 0 : i32
    %2 = arith.cmpi eq, %c16_i32, %c0_i32 : i32
    %c1_i32 = arith.constant 1 : i32
    %3 = arith.select %2, %c1_i32, %c16_i32 : i32
    %4 = vector.broadcast %3 : i32 to vector<32x1xi32>
    %5 = arith.remsi %1, %4 : vector<32x1xi32>
    %c0_i32_1 = arith.constant 0 : i32
    %6 = vector.broadcast %c0_i32_1 : i32 to vector<32x1xi32>
    %7 = arith.cmpi ne, %5, %6 : vector<32x1xi32>
    %c0_i32_2 = arith.constant 0 : i32
    %8 = vector.broadcast %c0_i32_2 : i32 to vector<32x1xi32>
    %9 = arith.cmpi slt, %5, %8 : vector<32x1xi32>
    %c0_i32_3 = arith.constant 0 : i32
    %10 = arith.cmpi slt, %3, %c0_i32_3 : i32
    %11 = vector.broadcast %10 : i1 to vector<32x1xi1>
    %12 = vector.broadcast %11 : vector<32x1xi1> to vector<32x1xi1>
    %13 = arith.xori %9, %12 : vector<32x1xi1>
    %14 = arith.andi %13, %7 : vector<32x1xi1>
    %15 = vector.broadcast %3 : i32 to vector<32x1xi32>
    %16 = arith.addi %5, %15 : vector<32x1xi32>
    %17 = arith.select %14, %16, %5 : vector<32x1xi1>, vector<32x1xi32>
    %c1_i32_4 = arith.constant 1 : i32
    %18 = vector.broadcast %c1_i32_4 : i32 to vector<32x1xi32>
    %19 = arith.cmpi sge, %17, %18 : vector<32x1xi32>
    %c2_i32 = arith.constant 2 : i32
    %20 = vector.broadcast %c2_i32 : i32 to vector<32x1xi32>
    %21 = arith.cmpi sge, %17, %20 : vector<32x1xi32>
    %c4_i32 = arith.constant 4 : i32
    %22 = vector.broadcast %c4_i32 : i32 to vector<32x1xi32>
    %23 = arith.cmpi sge, %17, %22 : vector<32x1xi32>
    %c0_5 = arith.constant 0 : index
    %c0_6 = arith.constant 0 : index
    %24 = vector.load %arg1[%c0_5, %c0_6] : memref<32x32xf32, #tpu.memory_space<vmem>>, vector<32x32xf32>
    %c0_7 = arith.constant 0 : index
    %c0_8 = arith.constant 0 : index
    %25 = vector.load %arg2[%c0_7, %c0_8] : memref<32x16xbf16, #tpu.memory_space<vmem>>, vector<32x16xbf16>
    %26 = arith.truncf %24 : vector<32x32xf32> to vector<32x32xbf16>
    %cst = arith.constant dense<0.000000e+00> : vector<32x16xf32>
    %27 = tpu.matmul %26, %25, %cst {dimension_numbers = #tpu.dot_dimension_numbers<[1], [0], [0], [1], [0, 0, 1, 1], [], []>} : vector<32x32xbf16>, vector<32x16xbf16>, vector<32x16xf32> -> vector<32x16xf32>
    %28 = vector.extract_strided_slice %0 {offsets = [0, 0], sizes = [1, 16], strides = [1, 1]} : vector<16x128xf32> to vector<1x16xf32>
    %29 = vector.broadcast %28 : vector<1x16xf32> to vector<32x16xf32>
    %30 = arith.addf %27, %29 : vector<32x16xf32>
    %cst_9 = arith.constant 0.000000e+00 : f32
    %31 = vector.broadcast %cst_9 : f32 to vector<32x16xf32>
    %32 = arith.maximumf %30, %31 : vector<32x16xf32>
    %c0_10 = arith.constant 0 : index
    %c0_11 = arith.constant 0 : index
    %33 = vector.load %arg3[%c0_10, %c0_11] : memref<16x64xbf16, #tpu.memory_space<vmem>>, vector<16x64xbf16>
    %34 = arith.truncf %32 : vector<32x16xf32> to vector<32x16xbf16>
    %cst_12 = arith.constant dense<0.000000e+00> : vector<32x64xf32>
    %35 = tpu.matmul %34, %33, %cst_12 {dimension_numbers = #tpu.dot_dimension_numbers<[1], [0], [0], [1], [0, 0, 1, 1], [], []>} : vector<32x16xbf16>, vector<16x64xbf16>, vector<32x64xf32> -> vector<32x64xf32>
    %36 = vector.extract_strided_slice %0 {offsets = [1, 0], sizes = [1, 64], strides = [1, 1]} : vector<16x128xf32> to vector<1x64xf32>
    %37 = vector.broadcast %36 : vector<1x64xf32> to vector<32x64xf32>
    %38 = arith.addf %35, %37 : vector<32x64xf32>
    %cst_13 = arith.constant 0.000000e+00 : f32
    %39 = vector.broadcast %cst_13 : f32 to vector<32x64xf32>
    %40 = arith.maximumf %38, %39 : vector<32x64xf32>
    %c0_14 = arith.constant 0 : index
    %c0_15 = arith.constant 0 : index
    %c0_16 = arith.constant 0 : index
    %41 = vector.load %arg4[%c0_14, %c0_15, %c0_16] : memref<6x128x64xbf16, #tpu.memory_space<vmem>>, vector<1x128x64xbf16>
    %42 = vector.shape_cast %41 : vector<1x128x64xbf16> to vector<128x64xbf16>
    %43 = vector.extract_strided_slice %0 {offsets = [2, 0], sizes = [1, 64], strides = [1, 1]} : vector<16x128xf32> to vector<1x64xf32>
    %c1_i32_17 = arith.constant 1 : i32
    %44 = tpu.dynamic_rotate %40 by %c1_i32_17 dim 0 : vector<32x64xf32>, i32 -> vector<32x64xf32>
    %cst_18 = arith.constant 0.000000e+00 : f32
    %45 = vector.shape_cast %19 : vector<32x1xi1> to vector<32x1xi1>
    %46 = vector.broadcast %45 : vector<32x1xi1> to vector<32x64xi1>
    %47 = vector.broadcast %cst_18 : f32 to vector<32x64xf32>
    %48 = arith.select %46, %44, %47 : vector<32x64xi1>, vector<32x64xf32>
    %49 = arith.truncf %48 : vector<32x64xf32> to vector<32x64xbf16>
    %50 = arith.truncf %40 : vector<32x64xf32> to vector<32x64xbf16>
    %51 = tpu.concatenate %49, %50 in 1 : vector<32x64xbf16>, vector<32x64xbf16> -> vector<32x128xbf16>
    %cst_19 = arith.constant dense<0.000000e+00> : vector<32x64xf32>
    %52 = tpu.matmul %51, %42, %cst_19 {dimension_numbers = #tpu.dot_dimension_numbers<[1], [0], [0], [1], [0, 0, 1, 1], [], []>} : vector<32x128xbf16>, vector<128x64xbf16>, vector<32x64xf32> -> vector<32x64xf32>
    %53 = vector.broadcast %43 : vector<1x64xf32> to vector<32x64xf32>
    %54 = arith.addf %52, %53 : vector<32x64xf32>
    %cst_20 = arith.constant 0.000000e+00 : f32
    %55 = vector.broadcast %cst_20 : f32 to vector<32x64xf32>
    %56 = arith.maximumf %54, %55 : vector<32x64xf32>
    %c1 = arith.constant 1 : index
    %c0_21 = arith.constant 0 : index
    %c0_22 = arith.constant 0 : index
    %57 = vector.load %arg4[%c1, %c0_21, %c0_22] : memref<6x128x64xbf16, #tpu.memory_space<vmem>>, vector<1x128x64xbf16>
    %58 = vector.shape_cast %57 : vector<1x128x64xbf16> to vector<128x64xbf16>
    %59 = vector.extract_strided_slice %0 {offsets = [3, 0], sizes = [1, 64], strides = [1, 1]} : vector<16x128xf32> to vector<1x64xf32>
    %c1_i32_23 = arith.constant 1 : i32
    %60 = tpu.dynamic_rotate %56 by %c1_i32_23 dim 0 : vector<32x64xf32>, i32 -> vector<32x64xf32>
    %cst_24 = arith.constant 0.000000e+00 : f32
    %61 = vector.shape_cast %19 : vector<32x1xi1> to vector<32x1xi1>
    %62 = vector.broadcast %61 : vector<32x1xi1> to vector<32x64xi1>
    %63 = vector.broadcast %cst_24 : f32 to vector<32x64xf32>
    %64 = arith.select %62, %60, %63 : vector<32x64xi1>, vector<32x64xf32>
    %65 = arith.truncf %64 : vector<32x64xf32> to vector<32x64xbf16>
    %66 = arith.truncf %56 : vector<32x64xf32> to vector<32x64xbf16>
    %67 = tpu.concatenate %65, %66 in 1 : vector<32x64xbf16>, vector<32x64xbf16> -> vector<32x128xbf16>
    %cst_25 = arith.constant dense<0.000000e+00> : vector<32x64xf32>
    %68 = tpu.matmul %67, %58, %cst_25 {dimension_numbers = #tpu.dot_dimension_numbers<[1], [0], [0], [1], [0, 0, 1, 1], [], []>} : vector<32x128xbf16>, vector<128x64xbf16>, vector<32x64xf32> -> vector<32x64xf32>
    %69 = vector.broadcast %59 : vector<1x64xf32> to vector<32x64xf32>
    %70 = arith.addf %68, %69 : vector<32x64xf32>
    %cst_26 = arith.constant 0.000000e+00 : f32
    %71 = vector.broadcast %cst_26 : f32 to vector<32x64xf32>
    %72 = arith.maximumf %70, %71 : vector<32x64xf32>
    %73 = arith.addf %72, %40 : vector<32x64xf32>
    %cst_27 = arith.constant 0.000000e+00 : f32
    %74 = vector.broadcast %cst_27 : f32 to vector<32x64xf32>
    %75 = arith.maximumf %73, %74 : vector<32x64xf32>
    %c2 = arith.constant 2 : index
    %c0_28 = arith.constant 0 : index
    %c0_29 = arith.constant 0 : index
    %76 = vector.load %arg4[%c2, %c0_28, %c0_29] : memref<6x128x64xbf16, #tpu.memory_space<vmem>>, vector<1x128x64xbf16>
    %77 = vector.shape_cast %76 : vector<1x128x64xbf16> to vector<128x64xbf16>
    %78 = vector.extract_strided_slice %0 {offsets = [4, 0], sizes = [1, 64], strides = [1, 1]} : vector<16x128xf32> to vector<1x64xf32>
    %c2_i32_30 = arith.constant 2 : i32
    %79 = tpu.dynamic_rotate %75 by %c2_i32_30 dim 0 : vector<32x64xf32>, i32 -> vector<32x64xf32>
    %cst_31 = arith.constant 0.000000e+00 : f32
    %80 = vector.shape_cast %21 : vector<32x1xi1> to vector<32x1xi1>
    %81 = vector.broadcast %80 : vector<32x1xi1> to vector<32x64xi1>
    %82 = vector.broadcast %cst_31 : f32 to vector<32x64xf32>
    %83 = arith.select %81, %79, %82 : vector<32x64xi1>, vector<32x64xf32>
    %84 = arith.truncf %83 : vector<32x64xf32> to vector<32x64xbf16>
    %85 = arith.truncf %75 : vector<32x64xf32> to vector<32x64xbf16>
    %86 = tpu.concatenate %84, %85 in 1 : vector<32x64xbf16>, vector<32x64xbf16> -> vector<32x128xbf16>
    %cst_32 = arith.constant dense<0.000000e+00> : vector<32x64xf32>
    %87 = tpu.matmul %86, %77, %cst_32 {dimension_numbers = #tpu.dot_dimension_numbers<[1], [0], [0], [1], [0, 0, 1, 1], [], []>} : vector<32x128xbf16>, vector<128x64xbf16>, vector<32x64xf32> -> vector<32x64xf32>
    %88 = vector.broadcast %78 : vector<1x64xf32> to vector<32x64xf32>
    %89 = arith.addf %87, %88 : vector<32x64xf32>
    %cst_33 = arith.constant 0.000000e+00 : f32
    %90 = vector.broadcast %cst_33 : f32 to vector<32x64xf32>
    %91 = arith.maximumf %89, %90 : vector<32x64xf32>
    %c3 = arith.constant 3 : index
    %c0_34 = arith.constant 0 : index
    %c0_35 = arith.constant 0 : index
    %92 = vector.load %arg4[%c3, %c0_34, %c0_35] : memref<6x128x64xbf16, #tpu.memory_space<vmem>>, vector<1x128x64xbf16>
    %93 = vector.shape_cast %92 : vector<1x128x64xbf16> to vector<128x64xbf16>
    %94 = vector.extract_strided_slice %0 {offsets = [5, 0], sizes = [1, 64], strides = [1, 1]} : vector<16x128xf32> to vector<1x64xf32>
    %c2_i32_36 = arith.constant 2 : i32
    %95 = tpu.dynamic_rotate %91 by %c2_i32_36 dim 0 : vector<32x64xf32>, i32 -> vector<32x64xf32>
    %cst_37 = arith.constant 0.000000e+00 : f32
    %96 = vector.shape_cast %21 : vector<32x1xi1> to vector<32x1xi1>
    %97 = vector.broadcast %96 : vector<32x1xi1> to vector<32x64xi1>
    %98 = vector.broadcast %cst_37 : f32 to vector<32x64xf32>
    %99 = arith.select %97, %95, %98 : vector<32x64xi1>, vector<32x64xf32>
    %100 = arith.truncf %99 : vector<32x64xf32> to vector<32x64xbf16>
    %101 = arith.truncf %91 : vector<32x64xf32> to vector<32x64xbf16>
    %102 = tpu.concatenate %100, %101 in 1 : vector<32x64xbf16>, vector<32x64xbf16> -> vector<32x128xbf16>
    %cst_38 = arith.constant dense<0.000000e+00> : vector<32x64xf32>
    %103 = tpu.matmul %102, %93, %cst_38 {dimension_numbers = #tpu.dot_dimension_numbers<[1], [0], [0], [1], [0, 0, 1, 1], [], []>} : vector<32x128xbf16>, vector<128x64xbf16>, vector<32x64xf32> -> vector<32x64xf32>
    %104 = vector.broadcast %94 : vector<1x64xf32> to vector<32x64xf32>
    %105 = arith.addf %103, %104 : vector<32x64xf32>
    %cst_39 = arith.constant 0.000000e+00 : f32
    %106 = vector.broadcast %cst_39 : f32 to vector<32x64xf32>
    %107 = arith.maximumf %105, %106 : vector<32x64xf32>
    %108 = arith.addf %107, %75 : vector<32x64xf32>
    %cst_40 = arith.constant 0.000000e+00 : f32
    %109 = vector.broadcast %cst_40 : f32 to vector<32x64xf32>
    %110 = arith.maximumf %108, %109 : vector<32x64xf32>
    %c4 = arith.constant 4 : index
    %c0_41 = arith.constant 0 : index
    %c0_42 = arith.constant 0 : index
    %111 = vector.load %arg4[%c4, %c0_41, %c0_42] : memref<6x128x64xbf16, #tpu.memory_space<vmem>>, vector<1x128x64xbf16>
    %112 = vector.shape_cast %111 : vector<1x128x64xbf16> to vector<128x64xbf16>
    %113 = vector.extract_strided_slice %0 {offsets = [6, 0], sizes = [1, 64], strides = [1, 1]} : vector<16x128xf32> to vector<1x64xf32>
    %c4_i32_43 = arith.constant 4 : i32
    %114 = tpu.dynamic_rotate %110 by %c4_i32_43 dim 0 : vector<32x64xf32>, i32 -> vector<32x64xf32>
    %cst_44 = arith.constant 0.000000e+00 : f32
    %115 = vector.shape_cast %23 : vector<32x1xi1> to vector<32x1xi1>
    %116 = vector.broadcast %115 : vector<32x1xi1> to vector<32x64xi1>
    %117 = vector.broadcast %cst_44 : f32 to vector<32x64xf32>
    %118 = arith.select %116, %114, %117 : vector<32x64xi1>, vector<32x64xf32>
    %119 = arith.truncf %118 : vector<32x64xf32> to vector<32x64xbf16>
    %120 = arith.truncf %110 : vector<32x64xf32> to vector<32x64xbf16>
    %121 = tpu.concatenate %119, %120 in 1 : vector<32x64xbf16>, vector<32x64xbf16> -> vector<32x128xbf16>
    %cst_45 = arith.constant dense<0.000000e+00> : vector<32x64xf32>
    %122 = tpu.matmul %121, %112, %cst_45 {dimension_numbers = #tpu.dot_dimension_numbers<[1], [0], [0], [1], [0, 0, 1, 1], [], []>} : vector<32x128xbf16>, vector<128x64xbf16>, vector<32x64xf32> -> vector<32x64xf32>
    %123 = vector.broadcast %113 : vector<1x64xf32> to vector<32x64xf32>
    %124 = arith.addf %122, %123 : vector<32x64xf32>
    %cst_46 = arith.constant 0.000000e+00 : f32
    %125 = vector.broadcast %cst_46 : f32 to vector<32x64xf32>
    %126 = arith.maximumf %124, %125 : vector<32x64xf32>
    %c5 = arith.constant 5 : index
    %c0_47 = arith.constant 0 : index
    %c0_48 = arith.constant 0 : index
    %127 = vector.load %arg4[%c5, %c0_47, %c0_48] : memref<6x128x64xbf16, #tpu.memory_space<vmem>>, vector<1x128x64xbf16>
    %128 = vector.shape_cast %127 : vector<1x128x64xbf16> to vector<128x64xbf16>
    %129 = vector.extract_strided_slice %0 {offsets = [7, 0], sizes = [1, 64], strides = [1, 1]} : vector<16x128xf32> to vector<1x64xf32>
    %c4_i32_49 = arith.constant 4 : i32
    %130 = tpu.dynamic_rotate %126 by %c4_i32_49 dim 0 : vector<32x64xf32>, i32 -> vector<32x64xf32>
    %cst_50 = arith.constant 0.000000e+00 : f32
    %131 = vector.shape_cast %23 : vector<32x1xi1> to vector<32x1xi1>
    %132 = vector.broadcast %131 : vector<32x1xi1> to vector<32x64xi1>
    %133 = vector.broadcast %cst_50 : f32 to vector<32x64xf32>
    %134 = arith.select %132, %130, %133 : vector<32x64xi1>, vector<32x64xf32>
    %135 = arith.truncf %134 : vector<32x64xf32> to vector<32x64xbf16>
    %136 = arith.truncf %126 : vector<32x64xf32> to vector<32x64xbf16>
    %137 = tpu.concatenate %135, %136 in 1 : vector<32x64xbf16>, vector<32x64xbf16> -> vector<32x128xbf16>
    %cst_51 = arith.constant dense<0.000000e+00> : vector<32x64xf32>
    %138 = tpu.matmul %137, %128, %cst_51 {dimension_numbers = #tpu.dot_dimension_numbers<[1], [0], [0], [1], [0, 0, 1, 1], [], []>} : vector<32x128xbf16>, vector<128x64xbf16>, vector<32x64xf32> -> vector<32x64xf32>
    %139 = vector.broadcast %129 : vector<1x64xf32> to vector<32x64xf32>
    %140 = arith.addf %138, %139 : vector<32x64xf32>
    %cst_52 = arith.constant 0.000000e+00 : f32
    %141 = vector.broadcast %cst_52 : f32 to vector<32x64xf32>
    %142 = arith.maximumf %140, %141 : vector<32x64xf32>
    %143 = arith.addf %142, %110 : vector<32x64xf32>
    %cst_53 = arith.constant 0.000000e+00 : f32
    %144 = vector.broadcast %cst_53 : f32 to vector<32x64xf32>
    %145 = arith.maximumf %143, %144 : vector<32x64xf32>
    %c0_54 = arith.constant 0 : index
    %c0_55 = arith.constant 0 : index
    %146 = vector.load %arg5[%c0_54, %c0_55] : memref<64x128xbf16, #tpu.memory_space<vmem>>, vector<64x128xbf16>
    %147 = arith.truncf %145 : vector<32x64xf32> to vector<32x64xbf16>
    %cst_56 = arith.constant dense<0.000000e+00> : vector<32x128xf32>
    %148 = tpu.matmul %147, %146, %cst_56 {dimension_numbers = #tpu.dot_dimension_numbers<[1], [0], [0], [1], [0, 0, 1, 1], [], []>} : vector<32x64xbf16>, vector<64x128xbf16>, vector<32x128xf32> -> vector<32x128xf32>
    %149 = vector.extract_strided_slice %0 {offsets = [8, 0], sizes = [1, 128], strides = [1, 1]} : vector<16x128xf32> to vector<1x128xf32>
    %150 = vector.broadcast %149 : vector<1x128xf32> to vector<32x128xf32>
    %151 = arith.addf %148, %150 : vector<32x128xf32>
    %152 = vector.extract_strided_slice %151 {offsets = [0, 0], sizes = [32, 64], strides = [1, 1]} : vector<32x128xf32> to vector<32x64xf32>
    %153 = vector.extract_strided_slice %151 {offsets = [0, 64], sizes = [32, 64], strides = [1, 1]} : vector<32x128xf32> to vector<32x64xf32>
    %154 = arith.addf %152, %153 : vector<32x64xf32>
    %155 = arith.negf %154 : vector<32x64xf32>
    %156 = math.exp %155 : vector<32x64xf32>
    %cst_57 = arith.constant 1.000000e+00 : f32
    %157 = vector.broadcast %cst_57 : f32 to vector<32x64xf32>
    %158 = arith.addf %157, %156 : vector<32x64xf32>
    %159 = arith.divf %157, %158 : vector<32x64xf32>
    %160 = arith.mulf %159, %152 : vector<32x64xf32>
    %cst_58 = arith.constant 1.000000e+00 : f32
    %161 = vector.broadcast %cst_58 : f32 to vector<32x64xf32>
    %162 = arith.subf %161, %159 : vector<32x64xf32>
    %163 = arith.mulf %162, %153 : vector<32x64xf32>
    %164 = arith.addf %160, %163 : vector<32x64xf32>
    %c0_59 = arith.constant 0 : index
    %c0_60 = arith.constant 0 : index
    %165 = vector.load %arg6[%c0_59, %c0_60] : memref<64x64xbf16, #tpu.memory_space<vmem>>, vector<64x64xbf16>
    %166 = arith.truncf %164 : vector<32x64xf32> to vector<32x64xbf16>
    %cst_61 = arith.constant dense<0.000000e+00> : vector<32x64xf32>
    %167 = tpu.matmul %166, %165, %cst_61 {dimension_numbers = #tpu.dot_dimension_numbers<[1], [0], [0], [1], [0, 0, 1, 1], [], []>} : vector<32x64xbf16>, vector<64x64xbf16>, vector<32x64xf32> -> vector<32x64xf32>
    %168 = vector.extract_strided_slice %0 {offsets = [9, 0], sizes = [1, 64], strides = [1, 1]} : vector<16x128xf32> to vector<1x64xf32>
    %169 = vector.broadcast %168 : vector<1x64xf32> to vector<32x64xf32>
    %170 = arith.addf %167, %169 : vector<32x64xf32>
    %cst_62 = arith.constant 0.000000e+00 : f32
    %171 = vector.broadcast %cst_62 : f32 to vector<32x64xf32>
    %172 = arith.maximumf %170, %171 : vector<32x64xf32>
    %cst_63 = arith.constant dense<0.000000e+00> : vector<32xf32>
    %173 = vector.multi_reduction <add>, %172, %cst_63 [1] : vector<32x64xf32> to vector<32xf32>
    %174 = vector.shape_cast %173 : vector<32xf32> to vector<32x1xf32>
    %cst_64 = arith.constant 6.400000e+01 : f32
    %175 = vector.broadcast %cst_64 : f32 to vector<32x1xf32>
    %176 = arith.divf %174, %175 : vector<32x1xf32>
    %177 = vector.broadcast %176 : vector<32x1xf32> to vector<32x64xf32>
    %178 = arith.subf %172, %177 : vector<32x64xf32>
    %179 = arith.mulf %178, %178 : vector<32x64xf32>
    %cst_65 = arith.constant dense<0.000000e+00> : vector<32xf32>
    %180 = vector.multi_reduction <add>, %179, %cst_65 [1] : vector<32x64xf32> to vector<32xf32>
    %181 = vector.shape_cast %180 : vector<32xf32> to vector<32x1xf32>
    %cst_66 = arith.constant 6.400000e+01 : f32
    %182 = vector.broadcast %cst_66 : f32 to vector<32x1xf32>
    %183 = arith.divf %181, %182 : vector<32x1xf32>
    %184 = vector.broadcast %176 : vector<32x1xf32> to vector<32x64xf32>
    %185 = arith.subf %172, %184 : vector<32x64xf32>
    %cst_67 = arith.constant 9.99999974E-6 : f32
    %186 = vector.broadcast %cst_67 : f32 to vector<32x1xf32>
    %187 = arith.addf %183, %186 : vector<32x1xf32>
    %188 = math.rsqrt %187 : vector<32x1xf32>
    %189 = vector.broadcast %188 : vector<32x1xf32> to vector<32x64xf32>
    %190 = arith.mulf %185, %189 : vector<32x64xf32>
    %191 = vector.extract_strided_slice %0 {offsets = [10, 0], sizes = [1, 64], strides = [1, 1]} : vector<16x128xf32> to vector<1x64xf32>
    %192 = vector.broadcast %191 : vector<1x64xf32> to vector<32x64xf32>
    %193 = arith.mulf %190, %192 : vector<32x64xf32>
    %194 = vector.extract_strided_slice %0 {offsets = [11, 0], sizes = [1, 64], strides = [1, 1]} : vector<16x128xf32> to vector<1x64xf32>
    %195 = vector.broadcast %194 : vector<1x64xf32> to vector<32x64xf32>
    %196 = arith.addf %193, %195 : vector<32x64xf32>
    %197 = arith.addf %196, %164 : vector<32x64xf32>
    %c0_68 = arith.constant 0 : index
    %c0_69 = arith.constant 0 : index
    %198 = vector.load %arg9[%c0_68, %c0_69] : memref<32x64xf32, #tpu.memory_space<vmem>>, vector<32x64xf32>
    tpu.vector_store %arg9[%c0_68, %c0_69], %197 {strides = array<i32>} : memref<32x64xf32, #tpu.memory_space<vmem>>, vector<32x64xf32>,
    %c0_70 = arith.constant 0 : index
    %c0_71 = arith.constant 0 : index
    %199 = vector.load %arg7[%c0_70, %c0_71] : memref<64x32xbf16, #tpu.memory_space<vmem>>, vector<64x32xbf16>
    %200 = arith.truncf %197 : vector<32x64xf32> to vector<32x64xbf16>
    %cst_72 = arith.constant dense<0.000000e+00> : vector<32x32xf32>
    %201 = tpu.matmul %200, %199, %cst_72 {dimension_numbers = #tpu.dot_dimension_numbers<[1], [0], [0], [1], [0, 0, 1, 1], [], []>} : vector<32x64xbf16>, vector<64x32xbf16>, vector<32x32xf32> -> vector<32x32xf32>
    %202 = vector.extract_strided_slice %0 {offsets = [12, 0], sizes = [1, 32], strides = [1, 1]} : vector<16x128xf32> to vector<1x32xf32>
    %203 = vector.broadcast %202 : vector<1x32xf32> to vector<32x32xf32>
    %204 = arith.addf %201, %203 : vector<32x32xf32>
    %cst_73 = arith.constant 0.000000e+00 : f32
    %205 = vector.broadcast %cst_73 : f32 to vector<32x32xf32>
    %206 = arith.maximumf %204, %205 : vector<32x32xf32>
    %207 = vector.extract_strided_slice %0 {offsets = [13, 0], sizes = [1, 32], strides = [1, 1]} : vector<16x128xf32> to vector<1x32xf32>
    %208 = vector.broadcast %207 : vector<1x32xf32> to vector<32x32xf32>
    %209 = arith.mulf %206, %208 : vector<32x32xf32>
    %cst_74 = arith.constant dense<0.000000e+00> : vector<32xf32>
    %210 = vector.multi_reduction <add>, %209, %cst_74 [1] : vector<32x32xf32> to vector<32xf32>
    %211 = vector.shape_cast %210 : vector<32xf32> to vector<32x1xf32>
    %212 = vector.extract_strided_slice %0 {offsets = [14, 0], sizes = [1, 1], strides = [1, 1]} : vector<16x128xf32> to vector<1x1xf32>
    %213 = vector.broadcast %212 : vector<1x1xf32> to vector<32x1xf32>
    %214 = arith.addf %211, %213 : vector<32x1xf32>
    %215 = arith.negf %214 : vector<32x1xf32>
    %216 = math.exp %215 : vector<32x1xf32>
    %cst_75 = arith.constant 1.000000e+00 : f32
    %217 = vector.broadcast %cst_75 : f32 to vector<32x1xf32>
    %218 = arith.addf %217, %216 : vector<32x1xf32>
    %219 = arith.divf %217, %218 : vector<32x1xf32>
    %c0_76 = arith.constant 0 : index
    %c0_77 = arith.constant 0 : index
    %220 = vector.load %arg10[%c0_76, %c0_77] : memref<32x1xf32, #tpu.memory_space<vmem>>, vector<32x1xf32>
    tpu.vector_store %arg10[%c0_76, %c0_77], %219 {strides = array<i32>} : memref<32x1xf32, #tpu.memory_space<vmem>>, vector<32x1xf32>,
    return
  }
  func.func @transform_0(%arg0: i32) -> (i32, i32) {
    %c0_i32 = arith.constant 0 : i32
    %c0_i32_0 = arith.constant 0 : i32
    return %arg0, %c0_i32 : i32, i32
  }
  func.func @transform_1(%arg0: i32) -> (i32, i32) {
    %c0_i32 = arith.constant 0 : i32
    %c0_i32_0 = arith.constant 0 : i32
    %c0_i32_1 = arith.constant 0 : i32
    return %c0_i32, %c0_i32_0 : i32, i32
  }
  func.func @transform_2(%arg0: i32) -> (i32, i32) {
    %c0_i32 = arith.constant 0 : i32
    %c0_i32_0 = arith.constant 0 : i32
    %c0_i32_1 = arith.constant 0 : i32
    return %c0_i32, %c0_i32_0 : i32, i32
  }
  func.func @transform_3(%arg0: i32) -> (i32, i32, i32) {
    %c0_i32 = arith.constant 0 : i32
    %c0_i32_0 = arith.constant 0 : i32
    %c0_i32_1 = arith.constant 0 : i32
    %c0_i32_2 = arith.constant 0 : i32
    return %c0_i32, %c0_i32_0, %c0_i32_1 : i32, i32, i32
  }
  func.func @transform_4(%arg0: i32) -> (i32, i32) {
    %c0_i32 = arith.constant 0 : i32
    %c0_i32_0 = arith.constant 0 : i32
    %c0_i32_1 = arith.constant 0 : i32
    return %c0_i32, %c0_i32_0 : i32, i32
  }
  func.func @transform_5(%arg0: i32) -> (i32, i32) {
    %c0_i32 = arith.constant 0 : i32
    %c0_i32_0 = arith.constant 0 : i32
    %c0_i32_1 = arith.constant 0 : i32
    return %c0_i32, %c0_i32_0 : i32, i32
  }
  func.func @transform_6(%arg0: i32) -> (i32, i32) {
    %c0_i32 = arith.constant 0 : i32
    %c0_i32_0 = arith.constant 0 : i32
    %c0_i32_1 = arith.constant 0 : i32
    return %c0_i32, %c0_i32_0 : i32, i32
  }
  func.func @transform_7(%arg0: i32) -> (i32, i32) {
    %c0_i32 = arith.constant 0 : i32
    %c0_i32_0 = arith.constant 0 : i32
    %c0_i32_1 = arith.constant 0 : i32
    return %c0_i32, %c0_i32_0 : i32, i32
  }
  func.func @transform_8(%arg0: i32) -> (i32, i32) {
    %c0_i32 = arith.constant 0 : i32
    %c0_i32_0 = arith.constant 0 : i32
    return %arg0, %c0_i32 : i32, i32
  }
  func.func @transform_9(%arg0: i32) -> (i32, i32) {
    %c0_i32 = arith.constant 0 : i32
    %c0_i32_0 = arith.constant 0 : i32
    return %arg0, %c0_i32 : i32, i32
  }
}

</mosaic_0001>

<llo_original>
// kernel: multimodal_forward.1
$region0: #{multimodal_forward.1}
  #allocation0 [shape = 'u32[]', space=smem, size = 0x4, offset = 0x4, fixed_abs, tag = 'smem constant byte address 0x4 - core index']
  #allocation1 [shape = 'u32[144,128]{1,0:T(1,128)}', space=vmem, size = 0x12000, scoped, tag = 'internal scratch']
  %s0 = inlined_call_operand.vmem [shape: f32[32,32], index: 0, kind: input, shape index: {}]
  %s1 = inlined_call_operand.vmem [shape: bf16[32,16], index: 1, kind: input, shape index: {}]
  %s2 = inlined_call_operand.vmem [shape: bf16[16,64], index: 2, kind: input, shape index: {}]
  %s3 = inlined_call_operand.vmem [shape: bf16[6,128,64], index: 3, kind: input, shape index: {}]
  %s4 = inlined_call_operand.vmem [shape: bf16[64,128], index: 4, kind: input, shape index: {}]
  %s5 = inlined_call_operand.vmem [shape: bf16[64,64], index: 5, kind: input, shape index: {}]
  %s6 = inlined_call_operand.vmem [shape: bf16[64,32], index: 6, kind: input, shape index: {}]
  %s7 = inlined_call_operand.vmem [shape: f32[16,128], index: 7, kind: input, shape index: {}]
  %s8 = inlined_call_operand.hbm [shape: f32[32,64], index: 8, kind: output, shape index: {0}]
  %s9 = inlined_call_operand.vmem [shape: f32[32,1], index: 9, kind: output, shape index: {1}]
  %10 = xla_tuple %s8, %s9
  %s11 = sld [smem:[#allocation0]]
  $region50: #{multimodal_forward.1} parent=0
    _
  %s13 = ssub.s32 1, %s11
  %s14 = scalar_select 0, %s13, %s11
  $region1: #{multimodal_forward.1} parent=0
    #allocation2 [shape = 'u8[16384]{0}', space=vmem, size = 0x4000, scoped, tag = 'output window, operand 0, single buffered']
    #allocation3 [shape = 's32[1]{0}', space=sflag, size = 0x4, scoped, tag = 'scoped memory for multimodal_forward.1']
    %15 = vsyncpa [#allocation3], 0
    // Predicated region
    $region2: #{multimodal_forward.1} parent=1 // pred_check
      _
    $region3: #{multimodal_forward.1} parent=1 // pred_check_branch
      %17 = sbr.rel (0) target = $region5
    $region4: #{multimodal_forward.1} parent=1 // pred_region
      _
    $region5: #{multimodal_forward.1} parent=1 // pred_fallthru
      _
    // Predicated region
    $region6: #{multimodal_forward.1} parent=1 // pred_check
      _
    $region7: #{multimodal_forward.1} parent=1 // pred_check_branch
      %19 = sbr.rel (0) target = $region9
    $region8: #{multimodal_forward.1} parent=1 // pred_region
      _
    $region9: #{multimodal_forward.1} parent=1 // pred_fallthru
      _
    // Predicated region
    $region10: #{multimodal_forward.1} parent=1 // pred_check
      _
    $region11: #{multimodal_forward.1} parent=1 // pred_check_branch
      %21 = sbr.rel (0) target = $region13
    $region12: #{multimodal_forward.1} parent=1 // pred_region
      _
    $region13: #{multimodal_forward.1} parent=1 // pred_fallthru
      _
    // Predicated region
    $region14: #{multimodal_forward.1} parent=1 // pred_check
      _
    $region15: #{multimodal_forward.1} parent=1 // pred_check_branch
      %23 = sbr.rel (0) target = $region17
    $region16: #{multimodal_forward.1} parent=1 // pred_region
      _
    $region17: #{multimodal_forward.1} parent=1 // pred_fallthru
      _
    // Predicated region
    $region18: #{multimodal_forward.1} parent=1 // pred_check
      _
    $region19: #{multimodal_forward.1} parent=1 // pred_check_branch
      %25 = sbr.rel (0) target = $region21
    $region20: #{multimodal_forward.1} parent=1 // pred_region
      _
    $region21: #{multimodal_forward.1} parent=1 // pred_fallthru
      _
    // Predicated region
    $region22: #{multimodal_forward.1} parent=1 // pred_check
      _
    $region23: #{multimodal_forward.1} parent=1 // pred_check_branch
      %27 = sbr.rel (0) target = $region25
    $region24: #{multimodal_forward.1} parent=1 // pred_region
      _
    $region25: #{multimodal_forward.1} parent=1 // pred_fallthru
      _
    // Predicated region
    $region26: #{multimodal_forward.1} parent=1 // pred_check
      _
    $region27: #{multimodal_forward.1} parent=1 // pred_check_branch
      %29 = sbr.rel (0) target = $region29
    $region28: #{multimodal_forward.1} parent=1 // pred_region
      _
    $region29: #{multimodal_forward.1} parent=1 // pred_fallthru
      _
    // Predicated region
    $region30: #{multimodal_forward.1} parent=1 // pred_check
      _
    $region31: #{multimodal_forward.1} parent=1 // pred_check_branch
      %31 = sbr.rel (0) target = $region33
    $region32: #{multimodal_forward.1} parent=1 // pred_region
      _
    $region33: #{multimodal_forward.1} parent=1 // pred_fallthru
      _
    %v33 = vld [vmem:[%s7] sm:$0xff]
    %v34 = vld [vmem:[%s7 + $0x8] sm:$0xff]
    %v35 = vlaneseq
    %v36 = vshrl.u32 %v35, 7
    %v37 = vadd.s32 %v36, 8
    %v38 = vadd.s32 %v36, 16
    %v39 = vadd.s32 %v36, 24
    %vm40 = vcmp.lt.s32.totalorder %v36, 0
    %v41 = vsub.s32 0, %v36
    %v42 = vsel %vm40, %v41, %v36
    %v43 = vshrl.u32 %v42, 4
    %v44 = vand.u32 %v42, 15
    %v45 = vsub.s32 0, %v44
    %v46 = vsel %vm40, %v45, %v44
    %vm47 = vcmp.lt.s32.totalorder %v37, 0
    %v48 = vsub.s32 0, %v37
    %v49 = vsel %vm47, %v48, %v37
    %v50 = vshrl.u32 %v49, 4
    %v51 = vand.u32 %v49, 15
    %v52 = vsub.s32 0, %v51
    %v53 = vsel %vm47, %v52, %v51
    %vm54 = vcmp.lt.s32.totalorder %v38, 0
    %v55 = vsub.s32 0, %v38
    %v56 = vsel %vm54, %v55, %v38
    %v57 = vshrl.u32 %v56, 4
    %v58 = vand.u32 %v56, 15
    %v59 = vsub.s32 0, %v58
    %v60 = vsel %vm54, %v59, %v58
    %vm61 = vcmp.lt.s32.totalorder %v39, 0
    %v62 = vsub.s32 0, %v39
    %v63 = vsel %vm61, %v62, %v39
    %v64 = vshrl.u32 %v63, 4
    %v65 = vand.u32 %v63, 15
    %v66 = vsub.s32 0, %v65
    %v67 = vsel %vm61, %v66, %v65
    %vm68 = vcmp.ne.s32.totalorder %v46, 0
    %vm69 = vcmp.ne.s32.totalorder %v53, 0
    %vm70 = vcmp.ne.s32.totalorder %v60, 0
    %vm71 = vcmp.ne.s32.totalorder %v67, 0
    %vm72 = vcmp.lt.s32.totalorder %v46, 0
    %vm73 = vcmp.lt.s32.totalorder %v53, 0
    %vm74 = vcmp.lt.s32.totalorder %v60, 0
    %vm75 = vcmp.lt.s32.totalorder %v67, 0
    %vm76 = vmand %vm72, %vm68
    %vm77 = vmand %vm73, %vm69
    %vm78 = vmand %vm74, %vm70
    %vm79 = vmand %vm75, %vm71
    %v80 = vadd.s32 %v46, 16
    %v81 = vadd.s32 %v53, 16
    %v82 = vadd.s32 %v60, 16
    %v83 = vadd.s32 %v67, 16
    %v84 = vsel %vm76, %v80, %v46
    %v85 = vsel %vm77, %v81, %v53
    %v86 = vsel %vm78, %v82, %v60
    %v87 = vsel %vm79, %v83, %v67
    %vm88 = vcmp.ge.s32.totalorder %v84, 1
    %vm89 = vcmp.ge.s32.totalorder %v85, 1
    %vm90 = vcmp.ge.s32.totalorder %v86, 1
    %vm91 = vcmp.ge.s32.totalorder %v87, 1
    %vm92 = vcmp.ge.s32.totalorder %v84, 2
    %vm93 = vcmp.ge.s32.totalorder %v85, 2
    %vm94 = vcmp.ge.s32.totalorder %v86, 2
    %vm95 = vcmp.ge.s32.totalorder %v87, 2
    %vm96 = vcmp.ge.s32.totalorder %v84, 4
    %vm97 = vcmp.ge.s32.totalorder %v85, 4
    %vm98 = vcmp.ge.s32.totalorder %v86, 4
    %vm99 = vcmp.ge.s32.totalorder %v87, 4
    %v100 = vld [vmem:[%s0] sm:$0xff]
    %v101 = vld [vmem:[%s0 + $0x8] sm:$0xff]
    %v102 = vld [vmem:[%s0 + $0x10] sm:$0xff]
    %v103 = vld [vmem:[%s0 + $0x18] sm:$0xff]
    %v104 = vld [vmem:[%s1] sm:$0xf]
    %v105 = vld [vmem:[%s1 + $0x4] sm:$0xf]
    %v106 = vld [vmem:[%s1 + $0x8] sm:$0xf]
    %v107 = vld [vmem:[%s1 + $0xc] sm:$0xf]
    %v108 = vpack.c.bf16 %v101, %v100
    %v109 = vpack.c.bf16 %v103, %v102
    %v110 = vlaneseq
    %v111 = vshrl.u32 %v110, 7
    %v112 = vsub.s32 0, %v111
    %v113 = vrot.slane %v33, %v112
    %v118 = vunpack.c.l.b16 %v104
    %v119 = vunpack.c.l.b16 %v105
    %v120 = vunpack.c.l.b16 %v106
    %v121 = vunpack.c.l.b16 %v107
    %v122 = vpack.c.b16 %v119, %v118
    %v123 = vpack.c.b16 %v121, %v120
    %vm126 = vcmask 261120
    %v128 = vsel %vm126, %v108, 0
    %v131 = vsel %vm126, %v109, 0
    %133 = vmatprep.subr.bf16.mxu0 0
    %134 = vmatpush1.bf16.msra.mxu0 %v122
    %135 = vmatprep.subr.bf16.mxu0 0
    %136 = vmatpush1.bf16.msra.mxu0 %v123
    %137 = vmatprep.subr.bf16.mxu0 0
    %138 = vmatpush1.bf16.msra.mxu0 0
    %139 = vmatprep.subr.bf16.mxu0 0
    %140 = vmatpush1.bf16.msra.mxu0 0
    %141 = vmatprep.subr.bf16.mxu0 0
    %142 = vmatpush1.bf16.msra.mxu0 0
    %143 = vmatprep.subr.bf16.mxu0 0
    %144 = vmatpush1.bf16.msra.mxu0 0
    %145 = vmatprep.subr.bf16.mxu0 0
    %146 = vmatpush1.bf16.msra.mxu0 0
    %147 = vmatprep.subr.bf16.mxu0 0
    %148 = vmatpush1.bf16.msra.mxu0 0
    %149 = vmatprep.subr.bf16.mxu0 0
    %150 = vmatpush1.bf16.msra.mxu0 0
    %151 = vmatprep.subr.bf16.mxu0 0
    %152 = vmatpush1.bf16.msra.mxu0 0
    %153 = vmatprep.subr.bf16.mxu0 0
    %154 = vmatpush1.bf16.msra.mxu0 0
    %155 = vmatprep.subr.bf16.mxu0 0
    %156 = vmatpush1.bf16.msra.mxu0 0
    %157 = vmatprep.subr.bf16.mxu0 0
    %158 = vmatpush1.bf16.msra.mxu0 0
    %159 = vmatprep.subr.bf16.mxu0 0
    %160 = vmatpush1.bf16.msra.mxu0 0
    %161 = vmatprep.subr.bf16.mxu0 0
    %162 = vmatpush1.bf16.msra.mxu0 0
    %163 = vmatprep.subr.bf16.mxu0 0
    %164 = vmatpush1.bf16.msra.mxu0 0
    %165 = vmatprep.mubr.bf16.mxu0 0
    %166 = vmatmul.mubr.bf16.gmra.mrb[0].mxu0 %v128
    %v167 = vpop.f32.mrb[0].mxu0
    %v168 = vadd.f32 %v113, %v167
    %v169 = vpop.f32.mrb[0].mxu0
    %v170 = vpop.f32.mrb[0].mxu0
    %v171 = vadd.f32 %v113, %v170
    %v172 = vpop.f32.mrb[0].mxu0
    %173 = vmatprep.mubr.bf16.mxu0 0
    %174 = vmatmul.mubr.bf16.gmra.mrb[0].mxu0 %v131
    %v175 = vpop.f32.mrb[0].mxu0
    %v176 = vadd.f32 %v113, %v175
    %v177 = vpop.f32.mrb[0].mxu0
    %v178 = vpop.f32.mrb[0].mxu0
    %v179 = vadd.f32 %v113, %v178
    %v180 = vpop.f32.mrb[0].mxu0
    %181 = vdwg.mxu0
    %v182 = vmax.f32 %v168, 0.0
    %v183 = vmax.f32 %v171, 0.0
    %v184 = vmax.f32 %v176, 0.0
    %v185 = vmax.f32 %v179, 0.0
    %v186 = vld [vmem:[%s2] sm:$0xf]
    %v187 = vld [vmem:[%s2 + $0x4] sm:$0xf]
    %v188 = vpack.c.bf16 %v183, %v182
    %v189 = vpack.c.bf16 %v185, %v184
    %v190 = vlaneseq
    %v191 = vshrl.u32 %v190, 7
    %v192 = vsub.s32 1, %v191
    %v193 = vrot.slane %v33, %v192
    %v196 = vunpack.c.l.b16 %v186
    %v197 = vunpack.c.l.b16 %v187
    %v198 = vpack.c.b16 %v197, %v196
    %vm200 = vcmask 130048
    %v202 = vsel %vm200, %v188, 0
    %v205 = vsel %vm200, %v189, 0
    %207 = vmatprep.subr.bf16.mxu0 0
    %208 = vmatpush1.bf16.msra.mxu0 %v198
    %209 = vmatprep.subr.bf16.mxu0 0
    %210 = vmatpush1.bf16.msra.mxu0 0
    %211 = vmatprep.subr.bf16.mxu0 0
    %212 = vmatpush1.bf16.msra.mxu0 0
    %213 = vmatprep.subr.bf16.mxu0 0
    %214 = vmatpush1.bf16.msra.mxu0 0
    %215 = vmatprep.subr.bf16.mxu0 0
    %216 = vmatpush1.bf16.msra.mxu0 0
    %217 = vmatprep.subr.bf16.mxu0 0
    %218 = vmatpush1.bf16.msra.mxu0 0
    %219 = vmatprep.subr.bf16.mxu0 0
    %220 = vmatpush1.bf16.msra.mxu0 0
    %221 = vmatprep.subr.bf16.mxu0 0
    %222 = vmatpush1.bf16.msra.mxu0 0
    %223 = vmatprep.subr.bf16.mxu0 0
    %224 = vmatpush1.bf16.msra.mxu0 0
    %225 = vmatprep.subr.bf16.mxu0 0
    %226 = vmatpush1.bf16.msra.mxu0 0
    %227 = vmatprep.subr.bf16.mxu0 0
    %228 = vmatpush1.bf16.msra.mxu0 0
    %229 = vmatprep.subr.bf16.mxu0 0
    %230 = vmatpush1.bf16.msra.mxu0 0
    %231 = vmatprep.subr.bf16.mxu0 0
    %232 = vmatpush1.bf16.msra.mxu0 0
    %233 = vmatprep.subr.bf16.mxu0 0
    %234 = vmatpush1.bf16.msra.mxu0 0
    %235 = vmatprep.subr.bf16.mxu0 0
    %236 = vmatpush1.bf16.msra.mxu0 0
    %237 = vmatprep.subr.bf16.mxu0 0
    %238 = vmatpush1.bf16.msra.mxu0 0
    %239 = vmatprep.mubr.bf16.mxu0 0
    %240 = vmatmul.mubr.bf16.gmra.mrb[0].mxu0 %v202
    %v241 = vpop.f32.mrb[0].mxu0
    %v242 = vadd.f32 %v193, %v241
    %v243 = vpop.f32.mrb[0].mxu0
    %v244 = vpop.f32.mrb[0].mxu0
    %v245 = vadd.f32 %v193, %v244
    %v246 = vpop.f32.mrb[0].mxu0
    %247 = vmatprep.mubr.bf16.mxu0 0
    %248 = vmatmul.mubr.bf16.gmra.mrb[0].mxu0 %v205
    %v249 = vpop.f32.mrb[0].mxu0
    %v250 = vadd.f32 %v193, %v249
    %v251 = vpop.f32.mrb[0].mxu0
    %v252 = vpop.f32.mrb[0].mxu0
    %v253 = vadd.f32 %v193, %v252
    %v254 = vpop.f32.mrb[0].mxu0
    %255 = vdwg.mxu0
    %v256 = vmax.f32 %v242, 0.0
    %v257 = vmax.f32 %v245, 0.0
    %v258 = vmax.f32 %v250, 0.0
    %v259 = vmax.f32 %v253, 0.0
    %v260 = vld [vmem:[%s3] sm:$0xf]
    %v261 = vld [vmem:[%s3 + $0x4] sm:$0xf]
    %v262 = vld [vmem:[%s3 + $0x8] sm:$0xf]
    %v263 = vld [vmem:[%s3 + $0xc] sm:$0xf]
    %v264 = vld [vmem:[%s3 + $0x10] sm:$0xf]
    %v265 = vld [vmem:[%s3 + $0x14] sm:$0xf]
    %v266 = vld [vmem:[%s3 + $0x18] sm:$0xf]
    %v267 = vld [vmem:[%s3 + $0x1c] sm:$0xf]
    %v268 = vld [vmem:[%s3 + $0x20] sm:$0xf]
    %v269 = vld [vmem:[%s3 + $0x24] sm:$0xf]
    %v270 = vld [vmem:[%s3 + $0x28] sm:$0xf]
    %v271 = vld [vmem:[%s3 + $0x2c] sm:$0xf]
    %v272 = vld [vmem:[%s3 + $0x30] sm:$0xf]
    %v273 = vld [vmem:[%s3 + $0x34] sm:$0xf]
    %v274 = vld [vmem:[%s3 + $0x38] sm:$0xf]
    %v275 = vld [vmem:[%s3 + $0x3c] sm:$0xf]
    %v276 = vrot.slane %v256, 7
    %v277 = vrot.slane %v257, 7
    %v278 = vrot.slane %v258, 7
    %v279 = vrot.slane %v259, 7
    %vm280 = vcmp.lt.s32.totalorder %v36, 1
    %v281 = vsel %vm280, %v278, %v279
    %v282 = vsel %vm280, %v277, %v278
    %v283 = vsel %vm280, %v276, %v277
    %v284 = vsel %vm280, %v279, %v276
    %v285 = vsel %vm88, 1, 0
    %v286 = vsel %vm89, 1, 0
    %v287 = vsel %vm90, 1, 0
    %v288 = vsel %vm91, 1, 0
    %vm289 = vcmp.eq.s32.totalorder %v285, 1
    %vm290 = vcmp.eq.s32.totalorder %v286, 1
    %vm291 = vcmp.eq.s32.totalorder %v287, 1
    %vm292 = vcmp.eq.s32.totalorder %v288, 1
    %v293 = vsel %vm289, %v284, 0.0
    %v294 = vsel %vm290, %v283, 0.0
    %v295 = vsel %vm291, %v282, 0.0
    %v296 = vsel %vm292, %v281, 0.0
    %v297 = vpack.c.bf16 %v294, %v293
    %v298 = vpack.c.bf16 %v296, %v295
    %v299 = vpack.c.bf16 %v257, %v256
    %v300 = vpack.c.bf16 %v259, %v258
    %303 = vrot.lane.b32.xlu0 %v299, 64
    %v304 = vpop.permute.xlu0 %303
    %305 = vrot.lane.b32.xlu0 %v300, 64
    %v306 = vpop.permute.xlu0 %305
    %vm307 = vcmask 523264
    %v310 = vsel %vm307, %v297, %v304
    %v314 = vsel %vm307, %v298, %v306
    %v316 = vlaneseq
    %v317 = vshrl.u32 %v316, 7
    %v318 = vsub.s32 2, %v317
    %v319 = vrot.slane %v33, %v318
    %v336 = vunpack.c.l.b16 %v260
    %v337 = vunpack.c.l.b16 %v261
    %v338 = vunpack.c.l.b16 %v262
    %v339 = vunpack.c.l.b16 %v263
    %v340 = vunpack.c.l.b16 %v264
    %v341 = vunpack.c.l.b16 %v265
    %v342 = vunpack.c.l.b16 %v266
    %v343 = vunpack.c.l.b16 %v267
    %v344 = vunpack.c.l.b16 %v268
    %v345 = vunpack.c.l.b16 %v269
    %v346 = vunpack.c.l.b16 %v270
    %v347 = vunpack.c.l.b16 %v271
    %v348 = vunpack.c.l.b16 %v272
    %v349 = vunpack.c.l.b16 %v273
    %v350 = vunpack.c.l.b16 %v274
    %v351 = vunpack.c.l.b16 %v275
    %v352 = vpack.c.b16 %v337, %v336
    %v353 = vpack.c.b16 %v339, %v338
    %v354 = vpack.c.b16 %v341, %v340
    %v355 = vpack.c.b16 %v343, %v342
    %v356 = vpack.c.b16 %v345, %v344
    %v357 = vpack.c.b16 %v347, %v346
    %v358 = vpack.c.b16 %v349, %v348
    %v359 = vpack.c.b16 %v351, %v350
    %368 = vmatprep.subr.bf16.mxu0 0
    %369 = vmatpush1.bf16.msra.mxu0 %v352
    %370 = vmatprep.subr.bf16.mxu0 0
    %371 = vmatpush1.bf16.msra.mxu0 %v353
    %372 = vmatprep.subr.bf16.mxu0 0
    %373 = vmatpush1.bf16.msra.mxu0 %v354
    %374 = vmatprep.subr.bf16.mxu0 0
    %375 = vmatpush1.bf16.msra.mxu0 %v355
    %376 = vmatprep.subr.bf16.mxu0 0
    %377 = vmatpush1.bf16.msra.mxu0 %v356
    %378 = vmatprep.subr.bf16.mxu0 0
    %379 = vmatpush1.bf16.msra.mxu0 %v357
    %380 = vmatprep.subr.bf16.mxu0 0
    %381 = vmatpush1.bf16.msra.mxu0 %v358
    %382 = vmatprep.subr.bf16.mxu0 0
    %383 = vmatpush1.bf16.msra.mxu0 %v359
    %384 = vmatprep.subr.bf16.mxu0 0
    %385 = vmatpush1.bf16.msra.mxu0 0
    %386 = vmatprep.subr.bf16.mxu0 0
    %387 = vmatpush1.bf16.msra.mxu0 0
    %388 = vmatprep.subr.bf16.mxu0 0
    %389 = vmatpush1.bf16.msra.mxu0 0
    %390 = vmatprep.subr.bf16.mxu0 0
    %391 = vmatpush1.bf16.msra.mxu0 0
    %392 = vmatprep.subr.bf16.mxu0 0
    %393 = vmatpush1.bf16.msra.mxu0 0
    %394 = vmatprep.subr.bf16.mxu0 0
    %395 = vmatpush1.bf16.msra.mxu0 0
    %396 = vmatprep.subr.bf16.mxu0 0
    %397 = vmatpush1.bf16.msra.mxu0 0
    %398 = vmatprep.subr.bf16.mxu0 0
    %399 = vmatpush1.bf16.msra.mxu0 0
    %400 = vmatprep.mubr.bf16.mxu0 0
    %401 = vmatmul.mubr.bf16.gmra.mrb[0].mxu0 %v310
    %v402 = vpop.f32.mrb[0].mxu0
    %v403 = vadd.f32 %v319, %v402
    %v404 = vpop.f32.mrb[0].mxu0
    %v405 = vpop.f32.mrb[0].mxu0
    %v406 = vadd.f32 %v319, %v405
    %v407 = vpop.f32.mrb[0].mxu0
    %408 = vmatprep.mubr.bf16.mxu0 0
    %409 = vmatmul.mubr.bf16.gmra.mrb[0].mxu0 %v314
    %v410 = vpop.f32.mrb[0].mxu0
    %v411 = vadd.f32 %v319, %v410
    %v412 = vpop.f32.mrb[0].mxu0
    %v413 = vpop.f32.mrb[0].mxu0
    %v414 = vadd.f32 %v319, %v413
    %v415 = vpop.f32.mrb[0].mxu0
    %416 = vdwg.mxu0
    %v417 = vmax.f32 %v403, 0.0
    %v418 = vmax.f32 %v406, 0.0
    %v419 = vmax.f32 %v411, 0.0
    %v420 = vmax.f32 %v414, 0.0
    %s421 = scalar_lea.vmem %s3, 64
    %v422 = vld [vmem:[%s421] sm:$0xf]
    %v423 = vld [vmem:[%s421 + $0x4] sm:$0xf]
    %v424 = vld [vmem:[%s421 + $0x8] sm:$0xf]
    %v425 = vld [vmem:[%s421 + $0xc] sm:$0xf]
    %v426 = vld [vmem:[%s421 + $0x10] sm:$0xf]
    %v427 = vld [vmem:[%s421 + $0x14] sm:$0xf]
    %v428 = vld [vmem:[%s421 + $0x18] sm:$0xf]
    %v429 = vld [vmem:[%s421 + $0x1c] sm:$0xf]
    %v430 = vld [vmem:[%s421 + $0x20] sm:$0xf]
    %v431 = vld [vmem:[%s421 + $0x24] sm:$0xf]
    %v432 = vld [vmem:[%s421 + $0x28] sm:$0xf]
    %v433 = vld [vmem:[%s421 + $0x2c] sm:$0xf]
    %v434 = vld [vmem:[%s421 + $0x30] sm:$0xf]
    %v435 = vld [vmem:[%s421 + $0x34] sm:$0xf]
    %v436 = vld [vmem:[%s421 + $0x38] sm:$0xf]
    %v437 = vld [vmem:[%s421 + $0x3c] sm:$0xf]
    %v438 = vrot.slane %v417, 7
    %v439 = vrot.slane %v418, 7
    %v440 = vrot.slane %v419, 7
    %v441 = vrot.slane %v420, 7
    %v442 = vsel %vm280, %v440, %v441
    %v443 = vsel %vm280, %v439, %v440
    %v444 = vsel %vm280, %v438, %v439
    %v445 = vsel %vm280, %v441, %v438
    %v446 = vsel %vm289, %v445, 0.0
    %v447 = vsel %vm290, %v444, 0.0
    %v448 = vsel %vm291, %v443, 0.0
    %v449 = vsel %vm292, %v442, 0.0
    %v450 = vpack.c.bf16 %v447, %v446
    %v451 = vpack.c.bf16 %v449, %v448
    %v452 = vpack.c.bf16 %v418, %v417
    %v453 = vpack.c.bf16 %v420, %v419
    %456 = vrot.lane.b32.xlu0 %v452, 64
    %v457 = vpop.permute.xlu0 %456
    %458 = vrot.lane.b32.xlu0 %v453, 64
    %v459 = vpop.permute.xlu0 %458
    %v462 = vsel %vm307, %v450, %v457
    %v466 = vsel %vm307, %v451, %v459
    %v468 = vlaneseq
    %v469 = vshrl.u32 %v468, 7
    %v470 = vsub.s32 3, %v469
    %v471 = vrot.slane %v33, %v470
    %v488 = vunpack.c.l.b16 %v422
    %v489 = vunpack.c.l.b16 %v423
    %v490 = vunpack.c.l.b16 %v424
    %v491 = vunpack.c.l.b16 %v425
    %v492 = vunpack.c.l.b16 %v426
    %v493 = vunpack.c.l.b16 %v427
    %v494 = vunpack.c.l.b16 %v428
    %v495 = vunpack.c.l.b16 %v429
    %v496 = vunpack.c.l.b16 %v430
    %v497 = vunpack.c.l.b16 %v431
    %v498 = vunpack.c.l.b16 %v432
    %v499 = vunpack.c.l.b16 %v433
    %v500 = vunpack.c.l.b16 %v434
    %v501 = vunpack.c.l.b16 %v435
    %v502 = vunpack.c.l.b16 %v436
    %v503 = vunpack.c.l.b16 %v437
    %v504 = vpack.c.b16 %v489, %v488
    %v505 = vpack.c.b16 %v491, %v490
    %v506 = vpack.c.b16 %v493, %v492
    %v507 = vpack.c.b16 %v495, %v494
    %v508 = vpack.c.b16 %v497, %v496
    %v509 = vpack.c.b16 %v499, %v498
    %v510 = vpack.c.b16 %v501, %v500
    %v511 = vpack.c.b16 %v503, %v502
    %520 = vmatprep.subr.bf16.mxu0 0
    %521 = vmatpush1.bf16.msra.mxu0 %v504
    %522 = vmatprep.subr.bf16.mxu0 0
    %523 = vmatpush1.bf16.msra.mxu0 %v505
    %524 = vmatprep.subr.bf16.mxu0 0
    %525 = vmatpush1.bf16.msra.mxu0 %v506
    %526 = vmatprep.subr.bf16.mxu0 0
    %527 = vmatpush1.bf16.msra.mxu0 %v507
    %528 = vmatprep.subr.bf16.mxu0 0
    %529 = vmatpush1.bf16.msra.mxu0 %v508
    %530 = vmatprep.subr.bf16.mxu0 0
    %531 = vmatpush1.bf16.msra.mxu0 %v509
    %532 = vmatprep.subr.bf16.mxu0 0
    %533 = vmatpush1.bf16.msra.mxu0 %v510
    %534 = vmatprep.subr.bf16.mxu0 0
    %535 = vmatpush1.bf16.msra.mxu0 %v511
    %536 = vmatprep.subr.bf16.mxu0 0
    %537 = vmatpush1.bf16.msra.mxu0 0
    %538 = vmatprep.subr.bf16.mxu0 0
    %539 = vmatpush1.bf16.msra.mxu0 0
    %540 = vmatprep.subr.bf16.mxu0 0
    %541 = vmatpush1.bf16.msra.mxu0 0
    %542 = vmatprep.subr.bf16.mxu0 0
    %543 = vmatpush1.bf16.msra.mxu0 0
    %544 = vmatprep.subr.bf16.mxu0 0
    %545 = vmatpush1.bf16.msra.mxu0 0
    %546 = vmatprep.subr.bf16.mxu0 0
    %547 = vmatpush1.bf16.msra.mxu0 0
    %548 = vmatprep.subr.bf16.mxu0 0
    %549 = vmatpush1.bf16.msra.mxu0 0
    %550 = vmatprep.subr.bf16.mxu0 0
    %551 = vmatpush1.bf16.msra.mxu0 0
    %552 = vmatprep.mubr.bf16.mxu0 0
    %553 = vmatmul.mubr.bf16.gmra.mrb[0].mxu0 %v462
    %v554 = vpop.f32.mrb[0].mxu0
    %v555 = vadd.f32 %v471, %v554
    %v556 = vpop.f32.mrb[0].mxu0
    %v557 = vpop.f32.mrb[0].mxu0
    %v558 = vadd.f32 %v471, %v557
    %v559 = vpop.f32.mrb[0].mxu0
    %560 = vmatprep.mubr.bf16.mxu0 0
    %561 = vmatmul.mubr.bf16.gmra.mrb[0].mxu0 %v466
    %v562 = vpop.f32.mrb[0].mxu0
    %v563 = vadd.f32 %v471, %v562
    %v564 = vpop.f32.mrb[0].mxu0
    %v565 = vpop.f32.mrb[0].mxu0
    %v566 = vadd.f32 %v471, %v565
    %v567 = vpop.f32.mrb[0].mxu0
    %568 = vdwg.mxu0
    %v569 = vmax.f32 %v555, 0.0
    %v570 = vmax.f32 %v558, 0.0
    %v571 = vmax.f32 %v563, 0.0
    %v572 = vmax.f32 %v566, 0.0
    %v573 = vadd.f32 %v569, %v256
    %v574 = vadd.f32 %v570, %v257
    %v575 = vadd.f32 %v571, %v258
    %v576 = vadd.f32 %v572, %v259
    %v577 = vmax.f32 %v573, 0.0
    %v578 = vmax.f32 %v574, 0.0
    %v579 = vmax.f32 %v575, 0.0
    %v580 = vmax.f32 %v576, 0.0
    %s581 = scalar_lea.vmem %s3, 128
    %v582 = vld [vmem:[%s581] sm:$0xf]
    %v583 = vld [vmem:[%s581 + $0x4] sm:$0xf]
    %v584 = vld [vmem:[%s581 + $0x8] sm:$0xf]
    %v585 = vld [vmem:[%s581 + $0xc] sm:$0xf]
    %v586 = vld [vmem:[%s581 + $0x10] sm:$0xf]
    %v587 = vld [vmem:[%s581 + $0x14] sm:$0xf]
    %v588 = vld [vmem:[%s581 + $0x18] sm:$0xf]
    %v589 = vld [vmem:[%s581 + $0x1c] sm:$0xf]
    %v590 = vld [vmem:[%s581 + $0x20] sm:$0xf]
    %v591 = vld [vmem:[%s581 + $0x24] sm:$0xf]
    %v592 = vld [vmem:[%s581 + $0x28] sm:$0xf]
    %v593 = vld [vmem:[%s581 + $0x2c] sm:$0xf]
    %v594 = vld [vmem:[%s581 + $0x30] sm:$0xf]
    %v595 = vld [vmem:[%s581 + $0x34] sm:$0xf]
    %v596 = vld [vmem:[%s581 + $0x38] sm:$0xf]
    %v597 = vld [vmem:[%s581 + $0x3c] sm:$0xf]
    %v598 = vrot.slane %v577, 6
    %v599 = vrot.slane %v578, 6
    %v600 = vrot.slane %v579, 6
    %v601 = vrot.slane %v580, 6
    %vm602 = vcmp.lt.s32.totalorder %v36, 2
    %v603 = vsel %vm602, %v600, %v601
    %v604 = vsel %vm602, %v599, %v600
    %v605 = vsel %vm602, %v598, %v599
    %v606 = vsel %vm602, %v601, %v598
    %v607 = vsel %vm92, 1, 0
    %v608 = vsel %vm93, 1, 0
    %v609 = vsel %vm94, 1, 0
    %v610 = vsel %vm95, 1, 0
    %vm611 = vcmp.eq.s32.totalorder %v607, 1
    %vm612 = vcmp.eq.s32.totalorder %v608, 1
    %vm613 = vcmp.eq.s32.totalorder %v609, 1
    %vm614 = vcmp.eq.s32.totalorder %v610, 1
    %v615 = vsel %vm611, %v606, 0.0
    %v616 = vsel %vm612, %v605, 0.0
    %v617 = vsel %vm613, %v604, 0.0
    %v618 = vsel %vm614, %v603, 0.0
    %v619 = vpack.c.bf16 %v616, %v615
    %v620 = vpack.c.bf16 %v618, %v617
    %v621 = vpack.c.bf16 %v578, %v577
    %v622 = vpack.c.bf16 %v580, %v579
    %625 = vrot.lane.b32.xlu0 %v621, 64
    %v626 = vpop.permute.xlu0 %625
    %627 = vrot.lane.b32.xlu0 %v622, 64
    %v628 = vpop.permute.xlu0 %627
    %v631 = vsel %vm307, %v619, %v626
    %v635 = vsel %vm307, %v620, %v628
    %v637 = vlaneseq
    %v638 = vshrl.u32 %v637, 7
    %v639 = vsub.s32 4, %v638
    %v640 = vrot.slane %v33, %v639
    %v657 = vunpack.c.l.b16 %v582
    %v658 = vunpack.c.l.b16 %v583
    %v659 = vunpack.c.l.b16 %v584
    %v660 = vunpack.c.l.b16 %v585
    %v661 = vunpack.c.l.b16 %v586
    %v662 = vunpack.c.l.b16 %v587
    %v663 = vunpack.c.l.b16 %v588
    %v664 = vunpack.c.l.b16 %v589
    %v665 = vunpack.c.l.b16 %v590
    %v666 = vunpack.c.l.b16 %v591
    %v667 = vunpack.c.l.b16 %v592
    %v668 = vunpack.c.l.b16 %v593
    %v669 = vunpack.c.l.b16 %v594
    %v670 = vunpack.c.l.b16 %v595
    %v671 = vunpack.c.l.b16 %v596
    %v672 = vunpack.c.l.b16 %v597
    %v673 = vpack.c.b16 %v658, %v657
    %v674 = vpack.c.b16 %v660, %v659
    %v675 = vpack.c.b16 %v662, %v661
    %v676 = vpack.c.b16 %v664, %v663
    %v677 = vpack.c.b16 %v666, %v665
    %v678 = vpack.c.b16 %v668, %v667
    %v679 = vpack.c.b16 %v670, %v669
    %v680 = vpack.c.b16 %v672, %v671
    %689 = vmatprep.subr.bf16.mxu0 0
    %690 = vmatpush1.bf16.msra.mxu0 %v673
    %691 = vmatprep.subr.bf16.mxu0 0
    %692 = vmatpush1.bf16.msra.mxu0 %v674
    %693 = vmatprep.subr.bf16.mxu0 0
    %694 = vmatpush1.bf16.msra.mxu0 %v675
    %695 = vmatprep.subr.bf16.mxu0 0
    %696 = vmatpush1.bf16.msra.mxu0 %v676
    %697 = vmatprep.subr.bf16.mxu0 0
    %698 = vmatpush1.bf16.msra.mxu0 %v677
    %699 = vmatprep.subr.bf16.mxu0 0
    %700 = vmatpush1.bf16.msra.mxu0 %v678
    %701 = vmatprep.subr.bf16.mxu0 0
    %702 = vmatpush1.bf16.msra.mxu0 %v679
    %703 = vmatprep.subr.bf16.mxu0 0
    %704 = vmatpush1.bf16.msra.mxu0 %v680
    %705 = vmatprep.subr.bf16.mxu0 0
    %706 = vmatpush1.bf16.msra.mxu0 0
    %707 = vmatprep.subr.bf16.mxu0 0
    %708 = vmatpush1.bf16.msra.mxu0 0
    %709 = vmatprep.subr.bf16.mxu0 0
    %710 = vmatpush1.bf16.msra.mxu0 0
    %711 = vmatprep.subr.bf16.mxu0 0
    %712 = vmatpush1.bf16.msra.mxu0 0
    %713 = vmatprep.subr.bf16.mxu0 0
    %714 = vmatpush1.bf16.msra.mxu0 0
    %715 = vmatprep.subr.bf16.mxu0 0
    %716 = vmatpush1.bf16.msra.mxu0 0
    %717 = vmatprep.subr.bf16.mxu0 0
    %718 = vmatpush1.bf16.msra.mxu0 0
    %719 = vmatprep.subr.bf16.mxu0 0
    %720 = vmatpush1.bf16.msra.mxu0 0
    %721 = vmatprep.mubr.bf16.mxu0 0
    %722 = vmatmul.mubr.bf16.gmra.mrb[0].mxu0 %v631
    %v723 = vpop.f32.mrb[0].mxu0
    %v724 = vadd.f32 %v640, %v723
    %v725 = vpop.f32.mrb[0].mxu0
    %v726 = vpop.f32.mrb[0].mxu0
    %v727 = vadd.f32 %v640, %v726
    %v728 = vpop.f32.mrb[0].mxu0
    %729 = vmatprep.mubr.bf16.mxu0 0
    %730 = vmatmul.mubr.bf16.gmra.mrb[0].mxu0 %v635
    %v731 = vpop.f32.mrb[0].mxu0
    %v732 = vadd.f32 %v640, %v731
    %v733 = vpop.f32.mrb[0].mxu0
    %v734 = vpop.f32.mrb[0].mxu0
    %v735 = vadd.f32 %v640, %v734
    %v736 = vpop.f32.mrb[0].mxu0
    %737 = vdwg.mxu0
    %v738 = vmax.f32 %v724, 0.0
    %v739 = vmax.f32 %v727, 0.0
    %v740 = vmax.f32 %v732, 0.0
    %v741 = vmax.f32 %v735, 0.0
    %s742 = scalar_lea.vmem %s3, 192
    %v743 = vld [vmem:[%s742] sm:$0xf]
    %v744 = vld [vmem:[%s742 + $0x4] sm:$0xf]
    %v745 = vld [vmem:[%s742 + $0x8] sm:$0xf]
    %v746 = vld [vmem:[%s742 + $0xc] sm:$0xf]
    %v747 = vld [vmem:[%s742 + $0x10] sm:$0xf]
    %v748 = vld [vmem:[%s742 + $0x14] sm:$0xf]
    %v749 = vld [vmem:[%s742 + $0x18] sm:$0xf]
    %v750 = vld [vmem:[%s742 + $0x1c] sm:$0xf]
    %v751 = vld [vmem:[%s742 + $0x20] sm:$0xf]
    %v752 = vld [vmem:[%s742 + $0x24] sm:$0xf]
    %v753 = vld [vmem:[%s742 + $0x28] sm:$0xf]
    %v754 = vld [vmem:[%s742 + $0x2c] sm:$0xf]
    %v755 = vld [vmem:[%s742 + $0x30] sm:$0xf]
    %v756 = vld [vmem:[%s742 + $0x34] sm:$0xf]
    %v757 = vld [vmem:[%s742 + $0x38] sm:$0xf]
    %v758 = vld [vmem:[%s742 + $0x3c] sm:$0xf]
    %v759 = vrot.slane %v738, 6
    %v760 = vrot.slane %v739, 6
    %v761 = vrot.slane %v740, 6
    %v762 = vrot.slane %v741, 6
    %v763 = vsel %vm602, %v761, %v762
    %v764 = vsel %vm602, %v760, %v761
    %v765 = vsel %vm602, %v759, %v760
    %v766 = vsel %vm602, %v762, %v759
    %v767 = vsel %vm611, %v766, 0.0
    %v768 = vsel %vm612, %v765, 0.0
    %v769 = vsel %vm613, %v764, 0.0
    %v770 = vsel %vm614, %v763, 0.0
    %v771 = vpack.c.bf16 %v768, %v767
    %v772 = vpack.c.bf16 %v770, %v769
    %v773 = vpack.c.bf16 %v739, %v738
    %v774 = vpack.c.bf16 %v741, %v740
    %777 = vrot.lane.b32.xlu0 %v773, 64
    %v778 = vpop.permute.xlu0 %777
    %779 = vrot.lane.b32.xlu0 %v774, 64
    %v780 = vpop.permute.xlu0 %779
    %v783 = vsel %vm307, %v771, %v778
    %v787 = vsel %vm307, %v772, %v780
    %v789 = vlaneseq
    %v790 = vshrl.u32 %v789, 7
    %v791 = vsub.s32 5, %v790
    %v792 = vrot.slane %v33, %v791
    %v809 = vunpack.c.l.b16 %v743
    %v810 = vunpack.c.l.b16 %v744
    %v811 = vunpack.c.l.b16 %v745
    %v812 = vunpack.c.l.b16 %v746
    %v813 = vunpack.c.l.b16 %v747
    %v814 = vunpack.c.l.b16 %v748
    %v815 = vunpack.c.l.b16 %v749
    %v816 = vunpack.c.l.b16 %v750
    %v817 = vunpack.c.l.b16 %v751
    %v818 = vunpack.c.l.b16 %v752
    %v819 = vunpack.c.l.b16 %v753
    %v820 = vunpack.c.l.b16 %v754
    %v821 = vunpack.c.l.b16 %v755
    %v822 = vunpack.c.l.b16 %v756
    %v823 = vunpack.c.l.b16 %v757
    %v824 = vunpack.c.l.b16 %v758
    %v825 = vpack.c.b16 %v810, %v809
    %v826 = vpack.c.b16 %v812, %v811
    %v827 = vpack.c.b16 %v814, %v813
    %v828 = vpack.c.b16 %v816, %v815
    %v829 = vpack.c.b16 %v818, %v817
    %v830 = vpack.c.b16 %v820, %v819
    %v831 = vpack.c.b16 %v822, %v821
    %v832 = vpack.c.b16 %v824, %v823
    %841 = vmatprep.subr.bf16.mxu0 0
    %842 = vmatpush1.bf16.msra.mxu0 %v825
    %843 = vmatprep.subr.bf16.mxu0 0
    %844 = vmatpush1.bf16.msra.mxu0 %v826
    %845 = vmatprep.subr.bf16.mxu0 0
    %846 = vmatpush1.bf16.msra.mxu0 %v827
    %847 = vmatprep.subr.bf16.mxu0 0
    %848 = vmatpush1.bf16.msra.mxu0 %v828
    %849 = vmatprep.subr.bf16.mxu0 0
    %850 = vmatpush1.bf16.msra.mxu0 %v829
    %851 = vmatprep.subr.bf16.mxu0 0
    %852 = vmatpush1.bf16.msra.mxu0 %v830
    %853 = vmatprep.subr.bf16.mxu0 0
    %854 = vmatpush1.bf16.msra.mxu0 %v831
    %855 = vmatprep.subr.bf16.mxu0 0
    %856 = vmatpush1.bf16.msra.mxu0 %v832
    %857 = vmatprep.subr.bf16.mxu0 0
    %858 = vmatpush1.bf16.msra.mxu0 0
    %859 = vmatprep.subr.bf16.mxu0 0
    %860 = vmatpush1.bf16.msra.mxu0 0
    %861 = vmatprep.subr.bf16.mxu0 0
    %862 = vmatpush1.bf16.msra.mxu0 0
    %863 = vmatprep.subr.bf16.mxu0 0
    %864 = vmatpush1.bf16.msra.mxu0 0
    %865 = vmatprep.subr.bf16.mxu0 0
    %866 = vmatpush1.bf16.msra.mxu0 0
    %867 = vmatprep.subr.bf16.mxu0 0
    %868 = vmatpush1.bf16.msra.mxu0 0
    %869 = vmatprep.subr.bf16.mxu0 0
    %870 = vmatpush1.bf16.msra.mxu0 0
    %871 = vmatprep.subr.bf16.mxu0 0
    %872 = vmatpush1.bf16.msra.mxu0 0
    %873 = vmatprep.mubr.bf16.mxu0 0
    %874 = vmatmul.mubr.bf16.gmra.mrb[0].mxu0 %v783
    %v875 = vpop.f32.mrb[0].mxu0
    %v876 = vadd.f32 %v792, %v875
    %v877 = vpop.f32.mrb[0].mxu0
    %v878 = vpop.f32.mrb[0].mxu0
    %v879 = vadd.f32 %v792, %v878
    %v880 = vpop.f32.mrb[0].mxu0
    %881 = vmatprep.mubr.bf16.mxu0 0
    %882 = vmatmul.mubr.bf16.gmra.mrb[0].mxu0 %v787
    %v883 = vpop.f32.mrb[0].mxu0
    %v884 = vadd.f32 %v792, %v883
    %v885 = vpop.f32.mrb[0].mxu0
    %v886 = vpop.f32.mrb[0].mxu0
    %v887 = vadd.f32 %v792, %v886
    %v888 = vpop.f32.mrb[0].mxu0
    %889 = vdwg.mxu0
    %v890 = vmax.f32 %v876, 0.0
    %v891 = vmax.f32 %v879, 0.0
    %v892 = vmax.f32 %v884, 0.0
    %v893 = vmax.f32 %v887, 0.0
    %v894 = vadd.f32 %v890, %v577
    %v895 = vadd.f32 %v891, %v578
    %v896 = vadd.f32 %v892, %v579
    %v897 = vadd.f32 %v893, %v580
    %v898 = vmax.f32 %v894, 0.0
    %v899 = vmax.f32 %v895, 0.0
    %v900 = vmax.f32 %v896, 0.0
    %v901 = vmax.f32 %v897, 0.0
    %s902 = scalar_lea.vmem %s3, 256
    %v903 = vld [vmem:[%s902] sm:$0xf]
    %v904 = vld [vmem:[%s902 + $0x4] sm:$0xf]
    %v905 = vld [vmem:[%s902 + $0x8] sm:$0xf]
    %v906 = vld [vmem:[%s902 + $0xc] sm:$0xf]
    %v907 = vld [vmem:[%s902 + $0x10] sm:$0xf]
    %v908 = vld [vmem:[%s902 + $0x14] sm:$0xf]
    %v909 = vld [vmem:[%s902 + $0x18] sm:$0xf]
    %v910 = vld [vmem:[%s902 + $0x1c] sm:$0xf]
    %v911 = vld [vmem:[%s902 + $0x20] sm:$0xf]
    %v912 = vld [vmem:[%s902 + $0x24] sm:$0xf]
    %v913 = vld [vmem:[%s902 + $0x28] sm:$0xf]
    %v914 = vld [vmem:[%s902 + $0x2c] sm:$0xf]
    %v915 = vld [vmem:[%s902 + $0x30] sm:$0xf]
    %v916 = vld [vmem:[%s902 + $0x34] sm:$0xf]
    %v917 = vld [vmem:[%s902 + $0x38] sm:$0xf]
    %v918 = vld [vmem:[%s902 + $0x3c] sm:$0xf]
    %v919 = vrot.slane %v898, 4
    %v920 = vrot.slane %v899, 4
    %v921 = vrot.slane %v900, 4
    %v922 = vrot.slane %v901, 4
    %vm923 = vcmp.lt.s32.totalorder %v36, 4
    %v924 = vsel %vm923, %v921, %v922
    %v925 = vsel %vm923, %v920, %v921
    %v926 = vsel %vm923, %v919, %v920
    %v927 = vsel %vm923, %v922, %v919
    %v928 = vsel %vm96, 1, 0
    %v929 = vsel %vm97, 1, 0
    %v930 = vsel %vm98, 1, 0
    %v931 = vsel %vm99, 1, 0
    %vm932 = vcmp.eq.s32.totalorder %v928, 1
    %vm933 = vcmp.eq.s32.totalorder %v929, 1
    %vm934 = vcmp.eq.s32.totalorder %v930, 1
    %vm935 = vcmp.eq.s32.totalorder %v931, 1
    %v936 = vsel %vm932, %v927, 0.0
    %v937 = vsel %vm933, %v926, 0.0
    %v938 = vsel %vm934, %v925, 0.0
    %v939 = vsel %vm935, %v924, 0.0
    %v940 = vpack.c.bf16 %v937, %v936
    %v941 = vpack.c.bf16 %v939, %v938
    %v942 = vpack.c.bf16 %v899, %v898
    %v943 = vpack.c.bf16 %v901, %v900
    %946 = vrot.lane.b32.xlu0 %v942, 64
    %v947 = vpop.permute.xlu0 %946
    %948 = vrot.lane.b32.xlu0 %v943, 64
    %v949 = vpop.permute.xlu0 %948
    %v952 = vsel %vm307, %v940, %v947
    %v956 = vsel %vm307, %v941, %v949
    %v958 = vlaneseq
    %v959 = vshrl.u32 %v958, 7
    %v960 = vsub.s32 6, %v959
    %v961 = vrot.slane %v33, %v960
    %v978 = vunpack.c.l.b16 %v903
    %v979 = vunpack.c.l.b16 %v904
    %v980 = vunpack.c.l.b16 %v905
    %v981 = vunpack.c.l.b16 %v906
    %v982 = vunpack.c.l.b16 %v907
    %v983 = vunpack.c.l.b16 %v908
    %v984 = vunpack.c.l.b16 %v909
    %v985 = vunpack.c.l.b16 %v910
    %v986 = vunpack.c.l.b16 %v911
    %v987 = vunpack.c.l.b16 %v912
    %v988 = vunpack.c.l.b16 %v913
    %v989 = vunpack.c.l.b16 %v914
    %v990 = vunpack.c.l.b16 %v915
    %v991 = vunpack.c.l.b16 %v916
    %v992 = vunpack.c.l.b16 %v917
    %v993 = vunpack.c.l.b16 %v918
    %v994 = vpack.c.b16 %v979, %v978
    %v995 = vpack.c.b16 %v981, %v980
    %v996 = vpack.c.b16 %v983, %v982
    %v997 = vpack.c.b16 %v985, %v984
    %v998 = vpack.c.b16 %v987, %v986
    %v999 = vpack.c.b16 %v989, %v988
    %v1000 = vpack.c.b16 %v991, %v990
    %v1001 = vpack.c.b16 %v993, %v992
    %1010 = vmatprep.subr.bf16.mxu0 0
    %1011 = vmatpush1.bf16.msra.mxu0 %v994
    %1012 = vmatprep.subr.bf16.mxu0 0
    %1013 = vmatpush1.bf16.msra.mxu0 %v995
    %1014 = vmatprep.subr.bf16.mxu0 0
    %1015 = vmatpush1.bf16.msra.mxu0 %v996
    %1016 = vmatprep.subr.bf16.mxu0 0
    %1017 = vmatpush1.bf16.msra.mxu0 %v997
    %1018 = vmatprep.subr.bf16.mxu0 0
    %1019 = vmatpush1.bf16.msra.mxu0 %v998
    %1020 = vmatprep.subr.bf16.mxu0 0
    %1021 = vmatpush1.bf16.msra.mxu0 %v999
    %1022 = vmatprep.subr.bf16.mxu0 0
    %1023 = vmatpush1.bf16.msra.mxu0 %v1000
    %1024 = vmatprep.subr.bf16.mxu0 0
    %1025 = vmatpush1.bf16.msra.mxu0 %v1001
    %1026 = vmatprep.subr.bf16.mxu0 0
    %1027 = vmatpush1.bf16.msra.mxu0 0
    %1028 = vmatprep.subr.bf16.mxu0 0
    %1029 = vmatpush1.bf16.msra.mxu0 0
    %1030 = vmatprep.subr.bf16.mxu0 0
    %1031 = vmatpush1.bf16.msra.mxu0 0
    %1032 = vmatprep.subr.bf16.mxu0 0
    %1033 = vmatpush1.bf16.msra.mxu0 0
    %1034 = vmatprep.subr.bf16.mxu0 0
    %1035 = vmatpush1.bf16.msra.mxu0 0
    %1036 = vmatprep.subr.bf16.mxu0 0
    %1037 = vmatpush1.bf16.msra.mxu0 0
    %1038 = vmatprep.subr.bf16.mxu0 0
    %1039 = vmatpush1.bf16.msra.mxu0 0
    %1040 = vmatprep.subr.bf16.mxu0 0
    %1041 = vmatpush1.bf16.msra.mxu0 0
    %1042 = vmatprep.mubr.bf16.mxu0 0
    %1043 = vmatmul.mubr.bf16.gmra.mrb[0].mxu0 %v952
    %v1044 = vpop.f32.mrb[0].mxu0
    %v1045 = vadd.f32 %v961, %v1044
    %v1046 = vpop.f32.mrb[0].mxu0
    %v1047 = vpop.f32.mrb[0].mxu0
    %v1048 = vadd.f32 %v961, %v1047
    %v1049 = vpop.f32.mrb[0].mxu0
    %1050 = vmatprep.mubr.bf16.mxu0 0
    %1051 = vmatmul.mubr.bf16.gmra.mrb[0].mxu0 %v956
    %v1052 = vpop.f32.mrb[0].mxu0
    %v1053 = vadd.f32 %v961, %v1052
    %v1054 = vpop.f32.mrb[0].mxu0
    %v1055 = vpop.f32.mrb[0].mxu0
    %v1056 = vadd.f32 %v961, %v1055
    %v1057 = vpop.f32.mrb[0].mxu0
    %1058 = vdwg.mxu0
    %v1059 = vmax.f32 %v1045, 0.0
    %v1060 = vmax.f32 %v1048, 0.0
    %v1061 = vmax.f32 %v1053, 0.0
    %v1062 = vmax.f32 %v1056, 0.0
    %s1063 = scalar_lea.vmem %s3, 320
    %v1064 = vld [vmem:[%s1063] sm:$0xf]
    %v1065 = vld [vmem:[%s1063 + $0x4] sm:$0xf]
    %v1066 = vld [vmem:[%s1063 + $0x8] sm:$0xf]
    %v1067 = vld [vmem:[%s1063 + $0xc] sm:$0xf]
    %v1068 = vld [vmem:[%s1063 + $0x10] sm:$0xf]
    %v1069 = vld [vmem:[%s1063 + $0x14] sm:$0xf]
    %v1070 = vld [vmem:[%s1063 + $0x18] sm:$0xf]
    %v1071 = vld [vmem:[%s1063 + $0x1c] sm:$0xf]
    %v1072 = vld [vmem:[%s1063 + $0x20] sm:$0xf]
    %v1073 = vld [vmem:[%s1063 + $0x24] sm:$0xf]
    %v1074 = vld [vmem:[%s1063 + $0x28] sm:$0xf]
    %v1075 = vld [vmem:[%s1063 + $0x2c] sm:$0xf]
    %v1076 = vld [vmem:[%s1063 + $0x30] sm:$0xf]
    %v1077 = vld [vmem:[%s1063 + $0x34] sm:$0xf]
    %v1078 = vld [vmem:[%s1063 + $0x38] sm:$0xf]
    %v1079 = vld [vmem:[%s1063 + $0x3c] sm:$0xf]
    %v1080 = vrot.slane %v1059, 4
    %v1081 = vrot.slane %v1060, 4
    %v1082 = vrot.slane %v1061, 4
    %v1083 = vrot.slane %v1062, 4
    %v1084 = vsel %vm923, %v1082, %v1083
    %v1085 = vsel %vm923, %v1081, %v1082
    %v1086 = vsel %vm923, %v1080, %v1081
    %v1087 = vsel %vm923, %v1083, %v1080
    %v1088 = vsel %vm932, %v1087, 0.0
    %v1089 = vsel %vm933, %v1086, 0.0
    %v1090 = vsel %vm934, %v1085, 0.0
    %v1091 = vsel %vm935, %v1084, 0.0
    %v1092 = vpack.c.bf16 %v1089, %v1088
    %v1093 = vpack.c.bf16 %v1091, %v1090
    %v1094 = vpack.c.bf16 %v1060, %v1059
    %v1095 = vpack.c.bf16 %v1062, %v1061
    %1098 = vrot.lane.b32.xlu0 %v1094, 64
    %v1099 = vpop.permute.xlu0 %1098
    %1100 = vrot.lane.b32.xlu0 %v1095, 64
    %v1101 = vpop.permute.xlu0 %1100
    %v1104 = vsel %vm307, %v1092, %v1099
    %v1108 = vsel %vm307, %v1093, %v1101
    %v1110 = vlaneseq
    %v1111 = vshrl.u32 %v1110, 7
    %v1112 = vsub.s32 7, %v1111
    %v1113 = vrot.slane %v33, %v1112
    %v1130 = vunpack.c.l.b16 %v1064
    %v1131 = vunpack.c.l.b16 %v1065
    %v1132 = vunpack.c.l.b16 %v1066
    %v1133 = vunpack.c.l.b16 %v1067
    %v1134 = vunpack.c.l.b16 %v1068
    %v1135 = vunpack.c.l.b16 %v1069
    %v1136 = vunpack.c.l.b16 %v1070
    %v1137 = vunpack.c.l.b16 %v1071
    %v1138 = vunpack.c.l.b16 %v1072
    %v1139 = vunpack.c.l.b16 %v1073
    %v1140 = vunpack.c.l.b16 %v1074
    %v1141 = vunpack.c.l.b16 %v1075
    %v1142 = vunpack.c.l.b16 %v1076
    %v1143 = vunpack.c.l.b16 %v1077
    %v1144 = vunpack.c.l.b16 %v1078
    %v1145 = vunpack.c.l.b16 %v1079
    %v1146 = vpack.c.b16 %v1131, %v1130
    %v1147 = vpack.c.b16 %v1133, %v1132
    %v1148 = vpack.c.b16 %v1135, %v1134
    %v1149 = vpack.c.b16 %v1137, %v1136
    %v1150 = vpack.c.b16 %v1139, %v1138
    %v1151 = vpack.c.b16 %v1141, %v1140
    %v1152 = vpack.c.b16 %v1143, %v1142
    %v1153 = vpack.c.b16 %v1145, %v1144
    %1162 = vmatprep.subr.bf16.mxu0 0
    %1163 = vmatpush1.bf16.msra.mxu0 %v1146
    %1164 = vmatprep.subr.bf16.mxu0 0
    %1165 = vmatpush1.bf16.msra.mxu0 %v1147
    %1166 = vmatprep.subr.bf16.mxu0 0
    %1167 = vmatpush1.bf16.msra.mxu0 %v1148
    %1168 = vmatprep.subr.bf16.mxu0 0
    %1169 = vmatpush1.bf16.msra.mxu0 %v1149
    %1170 = vmatprep.subr.bf16.mxu0 0
    %1171 = vmatpush1.bf16.msra.mxu0 %v1150
    %1172 = vmatprep.subr.bf16.mxu0 0
    %1173 = vmatpush1.bf16.msra.mxu0 %v1151
    %1174 = vmatprep.subr.bf16.mxu0 0
    %1175 = vmatpush1.bf16.msra.mxu0 %v1152
    %1176 = vmatprep.subr.bf16.mxu0 0
    %1177 = vmatpush1.bf16.msra.mxu0 %v1153
    %1178 = vmatprep.subr.bf16.mxu0 0
    %1179 = vmatpush1.bf16.msra.mxu0 0
    %1180 = vmatprep.subr.bf16.mxu0 0
    %1181 = vmatpush1.bf16.msra.mxu0 0
    %1182 = vmatprep.subr.bf16.mxu0 0
    %1183 = vmatpush1.bf16.msra.mxu0 0
    %1184 = vmatprep.subr.bf16.mxu0 0
    %1185 = vmatpush1.bf16.msra.mxu0 0
    %1186 = vmatprep.subr.bf16.mxu0 0
    %1187 = vmatpush1.bf16.msra.mxu0 0
    %1188 = vmatprep.subr.bf16.mxu0 0
    %1189 = vmatpush1.bf16.msra.mxu0 0
    %1190 = vmatprep.subr.bf16.mxu0 0
    %1191 = vmatpush1.bf16.msra.mxu0 0
    %1192 = vmatprep.subr.bf16.mxu0 0
    %1193 = vmatpush1.bf16.msra.mxu0 0
    %1194 = vmatprep.mubr.bf16.mxu0 0
    %1195 = vmatmul.mubr.bf16.gmra.mrb[0].mxu0 %v1104
    %v1196 = vpop.f32.mrb[0].mxu0
    %v1197 = vadd.f32 %v1113, %v1196
    %v1198 = vpop.f32.mrb[0].mxu0
    %v1199 = vpop.f32.mrb[0].mxu0
    %v1200 = vadd.f32 %v1113, %v1199
    %v1201 = vpop.f32.mrb[0].mxu0
    %1202 = vmatprep.mubr.bf16.mxu0 0
    %1203 = vmatmul.mubr.bf16.gmra.mrb[0].mxu0 %v1108
    %v1204 = vpop.f32.mrb[0].mxu0
    %v1205 = vadd.f32 %v1113, %v1204
    %v1206 = vpop.f32.mrb[0].mxu0
    %v1207 = vpop.f32.mrb[0].mxu0
    %v1208 = vadd.f32 %v1113, %v1207
    %v1209 = vpop.f32.mrb[0].mxu0
    %1210 = vdwg.mxu0
    %v1211 = vmax.f32 %v1197, 0.0
    %v1212 = vmax.f32 %v1200, 0.0
    %v1213 = vmax.f32 %v1205, 0.0
    %v1214 = vmax.f32 %v1208, 0.0
    %v1215 = vadd.f32 %v1211, %v898
    %v1216 = vadd.f32 %v1212, %v899
    %v1217 = vadd.f32 %v1213, %v900
    %v1218 = vadd.f32 %v1214, %v901
    %v1219 = vmax.f32 %v1215, 0.0
    %v1220 = vmax.f32 %v1216, 0.0
    %v1221 = vmax.f32 %v1217, 0.0
    %v1222 = vmax.f32 %v1218, 0.0
    %v1223 = vld [vmem:[%s4] sm:$0xf]
    %v1224 = vld [vmem:[%s4 + $0x4] sm:$0xf]
    %v1225 = vld [vmem:[%s4 + $0x8] sm:$0xf]
    %v1226 = vld [vmem:[%s4 + $0xc] sm:$0xf]
    %v1227 = vld [vmem:[%s4 + $0x10] sm:$0xf]
    %v1228 = vld [vmem:[%s4 + $0x14] sm:$0xf]
    %v1229 = vld [vmem:[%s4 + $0x18] sm:$0xf]
    %v1230 = vld [vmem:[%s4 + $0x1c] sm:$0xf]
    %v1231 = vpack.c.bf16 %v1220, %v1219
    %v1232 = vpack.c.bf16 %v1222, %v1221
    %v1233 = vlaneseq
    %v1234 = vshrl.u32 %v1233, 7
    %v1235 = vsub.s32 0, %v1234
    %v1236 = vrot.slane %v34, %v1235
    %v1245 = vunpack.c.l.b16 %v1223
    %v1246 = vunpack.c.l.b16 %v1224
    %v1247 = vunpack.c.l.b16 %v1225
    %v1248 = vunpack.c.l.b16 %v1226
    %v1249 = vunpack.c.l.b16 %v1227
    %v1250 = vunpack.c.l.b16 %v1228
    %v1251 = vunpack.c.l.b16 %v1229
    %v1252 = vunpack.c.l.b16 %v1230
    %v1253 = vpack.c.b16 %v1246, %v1245
    %v1254 = vpack.c.b16 %v1248, %v1247
    %v1255 = vpack.c.b16 %v1250, %v1249
    %v1256 = vpack.c.b16 %v1252, %v1251
    %v1262 = vsel %vm307, %v1231, 0
    %v1265 = vsel %vm307, %v1232, 0
    %1267 = vmatprep.subr.bf16.mxu0 0
    %1268 = vmatpush1.bf16.msra.mxu0 %v1253
    %1269 = vmatprep.subr.bf16.mxu0 0
    %1270 = vmatpush1.bf16.msra.mxu0 %v1254
    %1271 = vmatprep.subr.bf16.mxu0 0
    %1272 = vmatpush1.bf16.msra.mxu0 %v1255
    %1273 = vmatprep.subr.bf16.mxu0 0
    %1274 = vmatpush1.bf16.msra.mxu0 %v1256
    %1275 = vmatprep.subr.bf16.mxu0 0
    %1276 = vmatpush1.bf16.msra.mxu0 0
    %1277 = vmatprep.subr.bf16.mxu0 0
    %1278 = vmatpush1.bf16.msra.mxu0 0
    %1279 = vmatprep.subr.bf16.mxu0 0
    %1280 = vmatpush1.bf16.msra.mxu0 0
    %1281 = vmatprep.subr.bf16.mxu0 0
    %1282 = vmatpush1.bf16.msra.mxu0 0
    %1283 = vmatprep.subr.bf16.mxu0 0
    %1284 = vmatpush1.bf16.msra.mxu0 0
    %1285 = vmatprep.subr.bf16.mxu0 0
    %1286 = vmatpush1.bf16.msra.mxu0 0
    %1287 = vmatprep.subr.bf16.mxu0 0
    %1288 = vmatpush1.bf16.msra.mxu0 0
    %1289 = vmatprep.subr.bf16.mxu0 0
    %1290 = vmatpush1.bf16.msra.mxu0 0
    %1291 = vmatprep.subr.bf16.mxu0 0
    %1292 = vmatpush1.bf16.msra.mxu0 0
    %1293 = vmatprep.subr.bf16.mxu0 0
    %1294 = vmatpush1.bf16.msra.mxu0 0
    %1295 = vmatprep.subr.bf16.mxu0 0
    %1296 = vmatpush1.bf16.msra.mxu0 0
    %1297 = vmatprep.subr.bf16.mxu0 0
    %1298 = vmatpush1.bf16.msra.mxu0 0
    %1299 = vmatprep.mubr.bf16.mxu0 0
    %1300 = vmatmul.mubr.bf16.gmra.mrb[0].mxu0 %v1262
    %v1301 = vpop.f32.mrb[0].mxu0
    %v1302 = vadd.f32 %v1236, %v1301
    %v1303 = vpop.f32.mrb[0].mxu0
    %v1304 = vpop.f32.mrb[0].mxu0
    %v1305 = vadd.f32 %v1236, %v1304
    %v1306 = vpop.f32.mrb[0].mxu0
    %1307 = vmatprep.mubr.bf16.mxu0 0
    %1308 = vmatmul.mubr.bf16.gmra.mrb[0].mxu0 %v1265
    %v1309 = vpop.f32.mrb[0].mxu0
    %v1310 = vadd.f32 %v1236, %v1309
    %v1311 = vpop.f32.mrb[0].mxu0
    %v1312 = vpop.f32.mrb[0].mxu0
    %v1313 = vadd.f32 %v1236, %v1312
    %v1314 = vpop.f32.mrb[0].mxu0
    %1315 = vdwg.mxu0
    %1320 = vrot.lane.b32.xlu0 %v1302, 64
    %v1321 = vpop.permute.xlu0 %1320
    %1322 = vrot.lane.b32.xlu0 %v1305, 64
    %v1323 = vpop.permute.xlu0 %1322
    %1324 = vrot.lane.b32.xlu0 %v1310, 64
    %v1325 = vpop.permute.xlu0 %1324
    %1326 = vrot.lane.b32.xlu0 %v1313, 64
    %v1327 = vpop.permute.xlu0 %1326
    %v1332 = vadd.f32 %v1302, %v1321
    %v1333 = vadd.f32 %v1305, %v1323
    %v1334 = vadd.f32 %v1310, %v1325
    %v1335 = vadd.f32 %v1313, %v1327
    %v1336 = vxor.u32 %v1332, 2147483648
    %v1337 = vxor.u32 %v1333, 2147483648
    %v1338 = vxor.u32 %v1334, 2147483648
    %v1339 = vxor.u32 %v1335, 2147483648
    %v1340 = vmul.f32 %v1336, 1.442695
    %v1341 = vpow.pop %v1340
    %v1342 = vmul.f32 %v1337, 1.442695
    %v1343 = vpow.pop %v1342
    %v1344 = vmul.f32 %v1338, 1.442695
    %v1345 = vpow.pop %v1344
    %v1346 = vmul.f32 %v1339, 1.442695
    %v1347 = vpow.pop %v1346
    %v1348 = vadd.f32 %v1341, 1.0
    %v1349 = vadd.f32 %v1343, 1.0
    %v1350 = vadd.f32 %v1345, 1.0
    %v1351 = vadd.f32 %v1347, 1.0
    %v1352 = vrcp.pop %v1348
    %v1353 = vmul.f32 1.0, %v1352
    %v1354 = vrcp.pop %v1349
    %v1355 = vmul.f32 1.0, %v1354
    %v1356 = vrcp.pop %v1350
    %v1357 = vmul.f32 1.0, %v1356
    %v1358 = vrcp.pop %v1351
    %v1359 = vmul.f32 1.0, %v1358
    %v1360 = vmul.f32 %v1353, %v1302
    %v1361 = vmul.f32 %v1355, %v1305
    %v1362 = vmul.f32 %v1357, %v1310
    %v1363 = vmul.f32 %v1359, %v1313
    %v1364 = vsub.f32 1.0, %v1353
    %v1365 = vsub.f32 1.0, %v1355
    %v1366 = vsub.f32 1.0, %v1357
    %v1367 = vsub.f32 1.0, %v1359
    %v1368 = vmul.f32 %v1364, %v1321
    %v1369 = vmul.f32 %v1365, %v1323
    %v1370 = vmul.f32 %v1366, %v1325
    %v1371 = vmul.f32 %v1367, %v1327
    %v1372 = vadd.f32 %v1360, %v1368
    %v1373 = vadd.f32 %v1361, %v1369
    %v1374 = vadd.f32 %v1362, %v1370
    %v1375 = vadd.f32 %v1363, %v1371
    %v1376 = vld [vmem:[%s5] sm:$0xf]
    %v1377 = vld [vmem:[%s5 + $0x4] sm:$0xf]
    %v1378 = vld [vmem:[%s5 + $0x8] sm:$0xf]
    %v1379 = vld [vmem:[%s5 + $0xc] sm:$0xf]
    %v1380 = vld [vmem:[%s5 + $0x10] sm:$0xf]
    %v1381 = vld [vmem:[%s5 + $0x14] sm:$0xf]
    %v1382 = vld [vmem:[%s5 + $0x18] sm:$0xf]
    %v1383 = vld [vmem:[%s5 + $0x1c] sm:$0xf]
    %v1384 = vpack.c.bf16 %v1373, %v1372
    %v1385 = vpack.c.bf16 %v1375, %v1374
    %v1386 = vlaneseq
    %v1387 = vshrl.u32 %v1386, 7
    %v1388 = vsub.s32 1, %v1387
    %v1389 = vrot.slane %v34, %v1388
    %v1398 = vunpack.c.l.b16 %v1376
    %v1399 = vunpack.c.l.b16 %v1377
    %v1400 = vunpack.c.l.b16 %v1378
    %v1401 = vunpack.c.l.b16 %v1379
    %v1402 = vunpack.c.l.b16 %v1380
    %v1403 = vunpack.c.l.b16 %v1381
    %v1404 = vunpack.c.l.b16 %v1382
    %v1405 = vunpack.c.l.b16 %v1383
    %v1406 = vpack.c.b16 %v1399, %v1398
    %v1407 = vpack.c.b16 %v1401, %v1400
    %v1408 = vpack.c.b16 %v1403, %v1402
    %v1409 = vpack.c.b16 %v1405, %v1404
    %v1415 = vsel %vm307, %v1384, 0
    %v1418 = vsel %vm307, %v1385, 0
    %1420 = vmatprep.subr.bf16.mxu0 0
    %1421 = vmatpush1.bf16.msra.mxu0 %v1406
    %1422 = vmatprep.subr.bf16.mxu0 0
    %1423 = vmatpush1.bf16.msra.mxu0 %v1407
    %1424 = vmatprep.subr.bf16.mxu0 0
    %1425 = vmatpush1.bf16.msra.mxu0 %v1408
    %1426 = vmatprep.subr.bf16.mxu0 0
    %1427 = vmatpush1.bf16.msra.mxu0 %v1409
    %1428 = vmatprep.subr.bf16.mxu0 0
    %1429 = vmatpush1.bf16.msra.mxu0 0
    %1430 = vmatprep.subr.bf16.mxu0 0
    %1431 = vmatpush1.bf16.msra.mxu0 0
    %1432 = vmatprep.subr.bf16.mxu0 0
    %1433 = vmatpush1.bf16.msra.mxu0 0
    %1434 = vmatprep.subr.bf16.mxu0 0
    %1435 = vmatpush1.bf16.msra.mxu0 0
    %1436 = vmatprep.subr.bf16.mxu0 0
    %1437 = vmatpush1.bf16.msra.mxu0 0
    %1438 = vmatprep.subr.bf16.mxu0 0
    %1439 = vmatpush1.bf16.msra.mxu0 0
    %1440 = vmatprep.subr.bf16.mxu0 0
    %1441 = vmatpush1.bf16.msra.mxu0 0
    %1442 = vmatprep.subr.bf16.mxu0 0
    %1443 = vmatpush1.bf16.msra.mxu0 0
    %1444 = vmatprep.subr.bf16.mxu0 0
    %1445 = vmatpush1.bf16.msra.mxu0 0
    %1446 = vmatprep.subr.bf16.mxu0 0
    %1447 = vmatpush1.bf16.msra.mxu0 0
    %1448 = vmatprep.subr.bf16.mxu0 0
    %1449 = vmatpush1.bf16.msra.mxu0 0
    %1450 = vmatprep.subr.bf16.mxu0 0
    %1451 = vmatpush1.bf16.msra.mxu0 0
    %1452 = vmatprep.mubr.bf16.mxu0 0
    %1453 = vmatmul.mubr.bf16.gmra.mrb[0].mxu0 %v1415
    %v1454 = vpop.f32.mrb[0].mxu0
    %v1455 = vadd.f32 %v1389, %v1454
    %v1456 = vpop.f32.mrb[0].mxu0
    %v1457 = vpop.f32.mrb[0].mxu0
    %v1458 = vadd.f32 %v1389, %v1457
    %v1459 = vpop.f32.mrb[0].mxu0
    %1460 = vmatprep.mubr.bf16.mxu0 0
    %1461 = vmatmul.mubr.bf16.gmra.mrb[0].mxu0 %v1418
    %v1462 = vpop.f32.mrb[0].mxu0
    %v1463 = vadd.f32 %v1389, %v1462
    %v1464 = vpop.f32.mrb[0].mxu0
    %v1465 = vpop.f32.mrb[0].mxu0
    %v1466 = vadd.f32 %v1389, %v1465
    %v1467 = vpop.f32.mrb[0].mxu0
    %1468 = vdwg.mxu0
    %v1469 = vmax.f32 %v1455, 0.0
    %v1470 = vmax.f32 %v1458, 0.0
    %v1471 = vmax.f32 %v1463, 0.0
    %v1472 = vmax.f32 %v1466, 0.0
    %v1473 = vsel %vm307, %v1469, 0.0
    %1474 = vadd.xlane.f32.xlu0 %v1473
    %v1475 = vpop.xlane.xlu0 %1474
    %v1476 = vsel %vm307, %v1470, 0.0
    %1477 = vadd.xlane.f32.xlu0 %v1476
    %v1478 = vpop.xlane.xlu0 %1477
    %v1479 = vsel %vm307, %v1471, 0.0
    %1480 = vadd.xlane.f32.xlu0 %v1479
    %v1481 = vpop.xlane.xlu0 %1480
    %v1482 = vsel %vm307, %v1472, 0.0
    %1483 = vadd.xlane.f32.xlu0 %v1482
    %v1484 = vpop.xlane.xlu0 %1483
    %v1485 = vrcp.pop 64.0
    %v1486 = vmul.f32 %v1475, %v1485
    %v1487 = vmul.f32 %v1478, %v1485
    %v1488 = vmul.f32 %v1481, %v1485
    %v1489 = vmul.f32 %v1484, %v1485
    %v1490 = vsub.f32 %v1469, %v1486
    %v1491 = vsub.f32 %v1470, %v1487
    %v1492 = vsub.f32 %v1471, %v1488
    %v1493 = vsub.f32 %v1472, %v1489
    %v1494 = vmul.f32 %v1490, %v1490
    %v1495 = vmul.f32 %v1491, %v1491
    %v1496 = vmul.f32 %v1492, %v1492
    %v1497 = vmul.f32 %v1493, %v1493
    %v1498 = vsel %vm307, %v1494, 0.0
    %1499 = vadd.xlane.f32.xlu0 %v1498
    %v1500 = vpop.xlane.xlu0 %1499
    %v1501 = vsel %vm307, %v1495, 0.0
    %1502 = vadd.xlane.f32.xlu0 %v1501
    %v1503 = vpop.xlane.xlu0 %1502
    %v1504 = vsel %vm307, %v1496, 0.0
    %1505 = vadd.xlane.f32.xlu0 %v1504
    %v1506 = vpop.xlane.xlu0 %1505
    %v1507 = vsel %vm307, %v1497, 0.0
    %1508 = vadd.xlane.f32.xlu0 %v1507
    %v1509 = vpop.xlane.xlu0 %1508
    %v1510 = vmul.f32 %v1500, %v1485
    %v1511 = vmul.f32 %v1503, %v1485
    %v1512 = vmul.f32 %v1506, %v1485
    %v1513 = vmul.f32 %v1509, %v1485
    %v1514 = vadd.f32 %v1510, 1e-05
    %v1515 = vadd.f32 %v1511, 1e-05
    %v1516 = vadd.f32 %v1512, 1e-05
    %v1517 = vadd.f32 %v1513, 1e-05
    %v1518 = vrsqrt.pop %v1514
    %v1519 = vrsqrt.pop %v1515
    %v1520 = vrsqrt.pop %v1516
    %v1521 = vrsqrt.pop %v1517
    %v1522 = vmul.f32 %v1490, %v1518
    %v1523 = vmul.f32 %v1491, %v1519
    %v1524 = vmul.f32 %v1492, %v1520
    %v1525 = vmul.f32 %v1493, %v1521
    %v1526 = vlaneseq
    %v1527 = vshrl.u32 %v1526, 7
    %v1528 = vsub.s32 2, %v1527
    %v1529 = vrot.slane %v34, %v1528
    %v1530 = vmul.f32 %v1522, %v1529
    %v1531 = vmul.f32 %v1523, %v1529
    %v1532 = vmul.f32 %v1524, %v1529
    %v1533 = vmul.f32 %v1525, %v1529
    %v1534 = vlaneseq
    %v1535 = vshrl.u32 %v1534, 7
    %v1536 = vsub.s32 3, %v1535
    %v1537 = vrot.slane %v34, %v1536
    %v1538 = vadd.f32 %v1530, %v1537
    %v1539 = vadd.f32 %v1531, %v1537
    %v1540 = vadd.f32 %v1532, %v1537
    %v1541 = vadd.f32 %v1533, %v1537
    %v1542 = vadd.f32 %v1538, %v1372
    %v1543 = vadd.f32 %v1539, %v1373
    %v1544 = vadd.f32 %v1540, %v1374
    %v1545 = vadd.f32 %v1541, %v1375
    %1546 = vst.msk [vmem:[#allocation2] sm:$0xff] %vm307, %v1542
    %1547 = vst.msk [vmem:[#allocation2 + $0x8] sm:$0xff] %vm307, %v1543
    %1548 = vst.msk [vmem:[#allocation2 + $0x10] sm:$0xff] %vm307, %v1544
    %1549 = vst.msk [vmem:[#allocation2 + $0x18] sm:$0xff] %vm307, %v1545
    %v1550 = vld [vmem:[%s6] sm:$0xf]
    %v1551 = vld [vmem:[%s6 + $0x4] sm:$0xf]
    %v1552 = vld [vmem:[%s6 + $0x8] sm:$0xf]
    %v1553 = vld [vmem:[%s6 + $0xc] sm:$0xf]
    %v1554 = vld [vmem:[%s6 + $0x10] sm:$0xf]
    %v1555 = vld [vmem:[%s6 + $0x14] sm:$0xf]
    %v1556 = vld [vmem:[%s6 + $0x18] sm:$0xf]
    %v1557 = vld [vmem:[%s6 + $0x1c] sm:$0xf]
    %v1558 = vpack.c.bf16 %v1543, %v1542
    %v1559 = vpack.c.bf16 %v1545, %v1544
    %v1560 = vlaneseq
    %v1561 = vshrl.u32 %v1560, 7
    %v1562 = vsub.s32 4, %v1561
    %v1563 = vrot.slane %v34, %v1562
    %v1572 = vunpack.c.l.b16 %v1550
    %v1573 = vunpack.c.l.b16 %v1551
    %v1574 = vunpack.c.l.b16 %v1552
    %v1575 = vunpack.c.l.b16 %v1553
    %v1576 = vunpack.c.l.b16 %v1554
    %v1577 = vunpack.c.l.b16 %v1555
    %v1578 = vunpack.c.l.b16 %v1556
    %v1579 = vunpack.c.l.b16 %v1557
    %v1580 = vpack.c.b16 %v1573, %v1572
    %v1581 = vpack.c.b16 %v1575, %v1574
    %v1582 = vpack.c.b16 %v1577, %v1576
    %v1583 = vpack.c.b16 %v1579, %v1578
    %v1589 = vsel %vm307, %v1558, 0
    %v1592 = vsel %vm307, %v1559, 0
    %1594 = vmatprep.subr.bf16.mxu0 0
    %1595 = vmatpush1.bf16.msra.mxu0 %v1580
    %1596 = vmatprep.subr.bf16.mxu0 0
    %1597 = vmatpush1.bf16.msra.mxu0 %v1581
    %1598 = vmatprep.subr.bf16.mxu0 0
    %1599 = vmatpush1.bf16.msra.mxu0 %v1582
    %1600 = vmatprep.subr.bf16.mxu0 0
    %1601 = vmatpush1.bf16.msra.mxu0 %v1583
    %1602 = vmatprep.subr.bf16.mxu0 0
    %1603 = vmatpush1.bf16.msra.mxu0 0
    %1604 = vmatprep.subr.bf16.mxu0 0
    %1605 = vmatpush1.bf16.msra.mxu0 0
    %1606 = vmatprep.subr.bf16.mxu0 0
    %1607 = vmatpush1.bf16.msra.mxu0 0
    %1608 = vmatprep.subr.bf16.mxu0 0
    %1609 = vmatpush1.bf16.msra.mxu0 0
    %1610 = vmatprep.subr.bf16.mxu0 0
    %1611 = vmatpush1.bf16.msra.mxu0 0
    %1612 = vmatprep.subr.bf16.mxu0 0
    %1613 = vmatpush1.bf16.msra.mxu0 0
    %1614 = vmatprep.subr.bf16.mxu0 0
    %1615 = vmatpush1.bf16.msra.mxu0 0
    %1616 = vmatprep.subr.bf16.mxu0 0
    %1617 = vmatpush1.bf16.msra.mxu0 0
    %1618 = vmatprep.subr.bf16.mxu0 0
    %1619 = vmatpush1.bf16.msra.mxu0 0
    %1620 = vmatprep.subr.bf16.mxu0 0
    %1621 = vmatpush1.bf16.msra.mxu0 0
    %1622 = vmatprep.subr.bf16.mxu0 0
    %1623 = vmatpush1.bf16.msra.mxu0 0
    %1624 = vmatprep.subr.bf16.mxu0 0
    %1625 = vmatpush1.bf16.msra.mxu0 0
    %1626 = vmatprep.mubr.bf16.mxu0 0
    %1627 = vmatmul.mubr.bf16.gmra.mrb[0].mxu0 %v1589
    %v1628 = vpop.f32.mrb[0].mxu0
    %v1629 = vadd.f32 %v1563, %v1628
    %v1630 = vpop.f32.mrb[0].mxu0
    %v1631 = vpop.f32.mrb[0].mxu0
    %v1632 = vadd.f32 %v1563, %v1631
    %v1633 = vpop.f32.mrb[0].mxu0
    %1634 = vmatprep.mubr.bf16.mxu0 0
    %1635 = vmatmul.mubr.bf16.gmra.mrb[0].mxu0 %v1592
    %v1636 = vpop.f32.mrb[0].mxu0
    %v1637 = vadd.f32 %v1563, %v1636
    %v1638 = vpop.f32.mrb[0].mxu0
    %v1639 = vpop.f32.mrb[0].mxu0
    %v1640 = vadd.f32 %v1563, %v1639
    %v1641 = vpop.f32.mrb[0].mxu0
    %1642 = vdwg.mxu0
    %v1643 = vmax.f32 %v1629, 0.0
    %v1644 = vmax.f32 %v1632, 0.0
    %v1645 = vmax.f32 %v1637, 0.0
    %v1646 = vmax.f32 %v1640, 0.0
    %v1647 = vlaneseq
    %v1648 = vshrl.u32 %v1647, 7
    %v1649 = vsub.s32 5, %v1648
    %v1650 = vrot.slane %v34, %v1649
    %v1651 = vmul.f32 %v1643, %v1650
    %v1652 = vmul.f32 %v1644, %v1650
    %v1653 = vmul.f32 %v1645, %v1650
    %v1654 = vmul.f32 %v1646, %v1650
    %v1655 = vsel %vm126, %v1651, 0.0
    %1656 = vadd.xlane.f32.xlu0 %v1655
    %v1657 = vpop.xlane.xlu0 %1656
    %v1658 = vsel %vm126, %v1652, 0.0
    %1659 = vadd.xlane.f32.xlu0 %v1658
    %v1660 = vpop.xlane.xlu0 %1659
    %v1661 = vsel %vm126, %v1653, 0.0
    %1662 = vadd.xlane.f32.xlu0 %v1661
    %v1663 = vpop.xlane.xlu0 %1662
    %v1664 = vsel %vm126, %v1654, 0.0
    %1665 = vadd.xlane.f32.xlu0 %v1664
    %v1666 = vpop.xlane.xlu0 %1665
    %v1667 = vlaneseq
    %v1668 = vshrl.u32 %v1667, 7
    %v1669 = vsub.s32 6, %v1668
    %v1670 = vrot.slane %v34, %v1669
    %v1671 = vadd.f32 %v1657, %v1670
    %v1672 = vadd.f32 %v1660, %v1670
    %v1673 = vadd.f32 %v1663, %v1670
    %v1674 = vadd.f32 %v1666, %v1670
    %v1675 = vxor.u32 %v1671, 2147483648
    %v1676 = vxor.u32 %v1672, 2147483648
    %v1677 = vxor.u32 %v1673, 2147483648
    %v1678 = vxor.u32 %v1674, 2147483648
    %v1679 = vmul.f32 %v1675, 1.442695
    %v1680 = vpow.pop %v1679
    %v1681 = vmul.f32 %v1676, 1.442695
    %v1682 = vpow.pop %v1681
    %v1683 = vmul.f32 %v1677, 1.442695
    %v1684 = vpow.pop %v1683
    %v1685 = vmul.f32 %v1678, 1.442695
    %v1686 = vpow.pop %v1685
    %v1687 = vadd.f32 %v1680, 1.0
    %v1688 = vadd.f32 %v1682, 1.0
    %v1689 = vadd.f32 %v1684, 1.0
    %v1690 = vadd.f32 %v1686, 1.0
    %v1691 = vrcp.pop %v1687
    %v1692 = vmul.f32 1.0, %v1691
    %v1693 = vrcp.pop %v1688
    %v1694 = vmul.f32 1.0, %v1693
    %v1695 = vrcp.pop %v1689
    %v1696 = vmul.f32 1.0, %v1695
    %v1697 = vrcp.pop %v1690
    %v1698 = vmul.f32 1.0, %v1697
    %vm1699 = vcmask 7168
    %1700 = vst.msk [vmem:[%s9] sm:$0xff] %vm1699, %v1692
    %1701 = vst.msk [vmem:[%s9 + $0x8] sm:$0xff] %vm1699, %v1694
    %1702 = vst.msk [vmem:[%s9 + $0x10] sm:$0xff] %vm1699, %v1696
    %1703 = vst.msk [vmem:[%s9 + $0x18] sm:$0xff] %vm1699, %v1698
    // Predicated region
    $region34: #{multimodal_forward.1} parent=1 // pred_check
      _
    $region35: #{multimodal_forward.1} parent=1 // pred_check_branch
      %1705 = sbr.rel (0) target = $region37
    $region36: #{multimodal_forward.1} parent=1 // pred_region
      %s1707 = ssub.s32 512, 512
      %1708 = vsyncadd [#allocation3], %s1707
      %s1709 = sshll.u32 [#allocation2], 4
      %s1710 = int_to_ptr.vmem [resolvable:$true] %s1709
      %1715 = dma.vmem_to_hbm [thread:$0]  %s1710, 512, %s8, [#allocation3], 128, 128, 8
    $region37: #{multimodal_forward.1} parent=1 // pred_fallthru
      _
    // Predicated region
    $region38: #{multimodal_forward.1} parent=1 // pred_check
      _
    $region39: #{multimodal_forward.1} parent=1 // pred_check_branch
      %1717 = sbr.rel (0) target = $region41
    $region40: #{multimodal_forward.1} parent=1 // pred_region
      _
    $region41: #{multimodal_forward.1} parent=1 // pred_fallthru
      _
    // Predicated region
    $region42: #{multimodal_forward.1} parent=1 // pred_check
      _
    $region43: #{multimodal_forward.1} parent=1 // pred_check_branch
      %1719 = sbr.rel (0) target = $region45
    $region44: #{multimodal_forward.1} parent=1 // pred_region
      %1720 = dma.done [#allocation3], 512
    $region45: #{multimodal_forward.1} parent=1 // pred_fallthru
      _
    // Predicated region
    $region46: #{multimodal_forward.1} parent=1 // pred_check
      _
    $region47: #{multimodal_forward.1} parent=1 // pred_check_branch
      %1722 = sbr.rel (0) target = $region49
    $region48: #{multimodal_forward.1} parent=1 // pred_region
      _
    $region49: #{multimodal_forward.1} parent=1 // pred_fallthru
      _
    %1723 = vsyncpa [#allocation3], 1

</llo_original>
